<compile_context>
chip_gen: v7x
topology: tpu7x:2x2x1
jax: 0.10.0
libtpu: 0.0.40
codegen_flags: <defaults>
</compile_context>

<pallas_src>
import math
from functools import partial

import jax
import jax.numpy as jnp
import numpy as np
from jax.experimental import pallas as pl
from jax.experimental.pallas import tpu as pltpu


def _round_up(x, m):
    return (x + m - 1) // m * m


# ---------------------------------------------------------------------------
# Fused aggregate kernel:
#   acc = adj_tile @ S_tile                          (k-reduction, f32 acc)
#   out = maybe_tanh( (row_scale * acc) @ Wt )       (epilogue at k == last)
# ---------------------------------------------------------------------------
def _make_agg_kernel(has_wt, activate):
    def kernel(*refs):
        if has_wt:
            adj_ref, s_ref, scale_ref, wt_ref, o_ref, acc_ref = refs
        else:
            adj_ref, s_ref, scale_ref, o_ref, acc_ref = refs
            wt_ref = None
        k = pl.program_id(1)

        @pl.when(k == 0)
        def _():
            acc_ref[...] = jnp.zeros_like(acc_ref)

        a = adj_ref[...]
        if a.dtype != s_ref.dtype:
            a = a.astype(s_ref.dtype)       # int8 (quantized adj) -> compute dtype
        acc_ref[...] += jnp.dot(a, s_ref[...], preferred_element_type=jnp.float32)

        @pl.when(k == pl.num_programs(1) - 1)
        def _():
            # Per-row dequant scale (ones when quantization is off).
            z = acc_ref[...] * scale_ref[...]
            if has_wt:
                # Next layer's support, fused: (adj @ S) @ W.T [+ tanh]
                z = jnp.dot(z.astype(wt_ref.dtype), wt_ref[...],
                            preferred_element_type=jnp.float32)
                if activate:
                    z = jnp.tanh(z)
            o_ref[...] = z.astype(o_ref.dtype)

    return kernel


def _aggregate(adj_s, s, scale, wt, *, activate, out_dtype, tm, tk):
    """One streamed pass over adj: out = f(adj @ s) with optional fused epilogue."""
    n_pad = adj_s.shape[0]
    f_in = s.shape[1]
    f_out = wt.shape[1] if wt is not None else f_in
    grid = (n_pad // tm, n_pad // tk)

    in_specs = [
        pl.BlockSpec((tm, tk), lambda i, k: (i, k)),     # streamed adj tile
        pl.BlockSpec((tk, f_in), lambda i, k: (k, 0)),   # k-th slice of S (never fully resident)
        pl.BlockSpec((tm, 1), lambda i, k: (i, 0)),      # per-row dequant scale
    ]
    operands = [adj_s, s, scale]
    if wt is not None:
        in_specs.append(pl.BlockSpec((f_in, f_out), lambda i, k: (0, 0)))  # resident W.T (tiny)
        operands.append(wt)

    adj_isz = np.dtype(adj_s.dtype).itemsize
    s_isz = np.dtype(s.dtype).itemsize
    out_isz = np.dtype(out_dtype).itemsize
    cost = pl.CostEstimate(
        flops=2 * n_pad * n_pad * f_in
              + (2 * n_pad * f_in * f_out if wt is not None else 0),
        transcendentals=n_pad * f_out if (wt is not None and activate) else 0,
        bytes_accessed=n_pad * n_pad * adj_isz
                       + (n_pad // tm) * n_pad * f_in * s_isz
                       + n_pad * f_out * out_isz,
    )

    return pl.pallas_call(
        _make_agg_kernel(wt is not None, activate),
        out_shape=jax.ShapeDtypeStruct((n_pad, f_out), out_dtype),
        grid_spec=pltpu.PrefetchScalarGridSpec(
            num_scalar_prefetch=0,
            grid=grid,
            in_specs=in_specs,
            out_specs=pl.BlockSpec((tm, f_out), lambda i, k: (i, 0)),
            scratch_shapes=[pltpu.VMEM((tm, f_in), jnp.float32)],
        ),
        compiler_params=pltpu.CompilerParams(
            dimension_semantics=("parallel", "arbitrary"),
            vmem_limit_bytes=32 * 1024 * 1024,   # v5e default is only 16 MiB
        ),
        cost_estimate=cost,
    )(*operands)


def _plan_tiles(n, adj_itemsize):
    """Pick (tm, tk, n_pad): ~4-8 MiB adj tiles with minimal zero-padding.

    Balances the ~0.35 us fixed per-grid-step overhead against the HBM cost of
    padding N to a tile multiple (measured: 128-tiles hit ~30% of the HBM
    roofline, 512+ tiles ~85%+), so awkward N never falls back to tiny tiles.
    """
    if n >= 1024:
        tm = 512
    elif n >= 256:
        tm = 256
    else:
        tm = 128
    budget_bytes = 8 << 20                       # target adj tile bytes
    dmax = max(1, min(budget_bytes // (adj_itemsize * tm * tm), 8192 // tm))
    best = None
    for d in range(1, dmax + 1):
        tk = tm * d
        n_pad = _round_up(n, tk)                 # multiple of tk (and of tm)
        steps = (n_pad // tm) * (n_pad // tk)
        dma = tm * tk * adj_itemsize / 1.6e12    # nominal HBM BW across chips
        cost = steps * (dma + 0.35e-6)
        if best is None or cost < best[0]:
            best = (cost, tm, tk, n_pad)
    return best[1], best[2], best[3]


# ---------------------------------------------------------------------------
# Encoder wrapper (matches IGAE_encoder.forward)
# ---------------------------------------------------------------------------
def igae_encoder(x, adj, w1, w2, w3, *, compute_dtype=jnp.bfloat16,
                 quantize_adj=None, tm=None, tk=None):
    """x: [N, n_input], adj: [N, N] dense, w_i: [out_i, in_i] (PyTorch layout).

    compute_dtype: dtype of the streamed matmul operands (f32 accumulation).
      float32 reproduces the PyTorch numerics; bfloat16 (default) halves the
      dominant HBM traffic.
    quantize_adj: stream adj as int8 with a per-row scale (dequant folded into
      the f32 accumulator).  Default: enabled for non-f32 compute dtypes.
    """
    n = x.shape[0]
    if quantize_adj is None:
        quantize_adj = np.dtype(compute_dtype) != np.dtype(jnp.float32)
    adj_itemsize = 1 if quantize_adj else np.dtype(compute_dtype).itemsize

    if tm is None or tk is None:
        tm_auto, tk_auto, _ = _plan_tiles(n, adj_itemsize)
        if tm is None:
            tm = tm_auto
        if tk is None:
            tk = tk_auto
    assert tm % 128 == 0 and tk % 128 == 0, "tiles must be multiples of 128"
    n_pad = _round_up(n, tm * tk // math.gcd(tm, tk))

    if n_pad != n:                      # zero padding is inert for this math
        x = jnp.pad(x, ((0, n_pad - n), (0, 0)))
        adj = jnp.pad(adj, ((0, n_pad - n), (0, n_pad - n)))

    # adj operand: cast / quantize ONCE, reused by all three aggregate passes.
    if quantize_adj:
        adj32 = adj.astype(jnp.float32)
        amax = jnp.max(jnp.abs(adj32), axis=1, keepdims=True)
        scale = jnp.where(amax > 0, amax, 1.0) * (1.0 / 127.0)    # (n_pad, 1) f32
        adj_s = jnp.clip(jnp.round(adj32 / scale), -127.0, 127.0).astype(jnp.int8)
        # TODO(synk): on v7x, a float8_e4m3 adj stream would skip the in-kernel
        # int8->bf16 convert; kept int8 here so the same kernel lowers on v5e/v6e.
    else:
        scale = jnp.ones((n_pad, 1), jnp.float32)
        adj_s = adj.astype(compute_dtype)

    # Layer-1 support in plain XLA (one fused matmul+tanh).  Supports of
    # layers 2 and 3 are fused into the aggregate epilogues below.
    s = jnp.tanh(x.astype(jnp.float32) @ w1.T.astype(jnp.float32)).astype(compute_dtype)

    w2t = w2.T.astype(compute_dtype)
    w3t = w3.T.astype(compute_dtype)

    # S2 = tanh((adj @ S1) @ W2.T)
    s = _aggregate(adj_s, s, scale, w2t, activate=True,
                   out_dtype=compute_dtype, tm=tm, tk=tk)
    # S3 = (adj @ S2) @ W3.T
    s = _aggregate(adj_s, s, scale, w3t, activate=False,
                   out_dtype=compute_dtype, tm=tm, tk=tk)
    # z_igae = adj @ S3
    z = _aggregate(adj_s, s, scale, None, activate=False,
                   out_dtype=jnp.float32, tm=tm, tk=tk)
    return z[:n]


def xavier_uniform(key, out_features, in_features, dtype=jnp.float32):
    """torch.nn.init.xavier_uniform_ for a weight of shape [out, in]."""
    bound = math.sqrt(6.0 / (in_features + out_features))
    return jax.random.uniform(key, (out_features, in_features), dtype=dtype,
                              minval=-bound, maxval=bound)


if __name__ == "__main__":
    N, n_input = 64, 16
    enc1, enc2, enc3 = 32, 16, 8

    key = jax.random.PRNGKey(0)
    k_x, k_a, k_w1, k_w2, k_w3 = jax.random.split(key, 5)

    def make_graph(kx, ka, n):
        xg = jax.random.normal(kx, (n, n_input), dtype=jnp.float32)
        a = jax.random.uniform(ka, (n, n), dtype=jnp.float32)
        a = (a + a.T) * 0.5
        a = a / jnp.sum(a, axis=1, keepdims=True)       # row-normalized adjacency
        return xg, a

    def reference(xg, a, w1, w2, w3):
        z = a @ jnp.tanh(xg @ w1.T)
        z = a @ jnp.tanh(z @ w2.T)
        return a @ (z @ w3.T)

    w1 = xavier_uniform(k_w1, enc1, n_input)
    w2 = xavier_uniform(k_w2, enc2, enc1)
    w3 = xavier_uniform(k_w3, enc3, enc2)

    x, adj = make_graph(k_x, k_a, N)
    z_ref = reference(x, adj, w1, w2, w3)

    # 1) Full-precision path (matches the PyTorch forward numerics).
    enc_f32 = jax.jit(partial(igae_encoder, compute_dtype=jnp.float32))
    z = enc_f32(x, adj, w1, w2, w3)
    jax.block_until_ready(z)
    assert z.shape == (N, enc3)
    assert jnp.allclose(z, z_ref, rtol=2e-2, atol=1e-4)

    # 2) bf16 fast path without adj quantization.
    enc_bf16 = jax.jit(partial(igae_encoder, compute_dtype=jnp.bfloat16,
                               quantize_adj=False))
    z = enc_bf16(x, adj, w1, w2, w3)
    jax.block_until_ready(z)
    assert z.shape == (N, enc3)
    assert jnp.allclose(z, z_ref, rtol=1e-1, atol=1e-2)

    # 3) Default fast path: bf16 compute + int8-quantized adj stream.
    enc_fast = jax.jit(igae_encoder)
    z = enc_fast(x, adj, w1, w2, w3)
    jax.block_until_ready(z)
    assert z.shape == (N, enc3)
    assert jnp.allclose(z, z_ref, rtol=1e-1, atol=1e-2)

    # 4) Non-multiple-of-128 node count + forced small tiles: exercises the
    #    zero-padding path and the multi-step k-reduction / accumulator logic.
    N2 = 200
    x2, adj2 = make_graph(k_x, k_a, N2)
    z2_ref = reference(x2, adj2, w1, w2, w3)
    enc_tiled = jax.jit(partial(igae_encoder, compute_dtype=jnp.float32,
                                quantize_adj=False, tm=128, tk=128))
    z2 = enc_tiled(x2, adj2, w1, w2, w3)
    jax.block_until_ready(z2)
    assert z2.shape == (N2, enc3)
    assert jnp.allclose(z2, z2_ref, rtol=2e-2, atol=1e-4)

    # 5) Same graph through the auto-tiled default (bf16 + int8 adj) path.
    z2f = enc_fast(x2, adj2, w1, w2, w3)
    jax.block_until_ready(z2f)
    assert z2f.shape == (N2, enc3)
    assert jnp.allclose(z2f, z2_ref, rtol=1e-1, atol=1e-2)

    print("KERNEL_OK")
</pallas_src>

<mosaic_0001>
module attributes {stable_mosaic.version = 11 : i64} {
  func.func @kernel(%arg0: i32, %arg1: i32, %arg2: memref<128x128xf32, #tpu.memory_space<vmem>>, %arg3: memref<128x16xf32, #tpu.memory_space<vmem>>, %arg4: memref<128x1xf32, #tpu.memory_space<vmem>>, %arg5: memref<16x8xf32, #tpu.memory_space<vmem>>, %arg6: memref<128x8xf32, #tpu.memory_space<vmem>>, %arg7: memref<128x16xf32, #tpu.memory_space<vmem>>) attributes {dimension_semantics = [#tpu.dimension_semantics<parallel>, #tpu.dimension_semantics<arbitrary>], iteration_bounds = array<i64: 1, 1>, scalar_prefetch = 0 : i64, scratch_operands = 1 : i64, tpu.core_type = #tpu.core_type<tc>, window_params = [{transform_indices = @transform_0, window_bounds = array<i64: 128, 128>}, {transform_indices = @transform_1, window_bounds = array<i64: 128, 16>}, {transform_indices = @transform_2, window_bounds = array<i64: 128, 1>}, {pipeline_mode = #tpu.pipeline_mode<synchronous>, transform_indices = @transform_3, window_bounds = array<i64: 16, 8>}, {transform_indices = @transform_4, window_bounds = array<i64: 128, 8>}]} {
    %c0_i32 = arith.constant 0 : i32
    %0 = arith.cmpi eq, %arg1, %c0_i32 : i32
    %1 = arith.extui %0 : i1 to i32
    %c0_i32_0 = arith.constant 0 : i32
    %2 = arith.cmpi ne, %1, %c0_i32_0 : i32
    scf.if %2 {
      %cst_10 = arith.constant 0.000000e+00 : f32
      %12 = vector.broadcast %cst_10 : f32 to vector<128x16xf32>
      %c0_11 = arith.constant 0 : index
      %c0_12 = arith.constant 0 : index
      %13 = vector.load %arg7[%c0_11, %c0_12] : memref<128x16xf32, #tpu.memory_space<vmem>>, vector<128x16xf32>
      tpu.vector_store %arg7[%c0_11, %c0_12], %12 {strides = array<i32>} : memref<128x16xf32, #tpu.memory_space<vmem>>, vector<128x16xf32>,
    } else {
    }
    %c0 = arith.constant 0 : index
    %c0_1 = arith.constant 0 : index
    %3 = vector.load %arg2[%c0, %c0_1] : memref<128x128xf32, #tpu.memory_space<vmem>>, vector<128x128xf32>
    %c0_2 = arith.constant 0 : index
    %c0_3 = arith.constant 0 : index
    %4 = vector.load %arg7[%c0_2, %c0_3] : memref<128x16xf32, #tpu.memory_space<vmem>>, vector<128x16xf32>
    %c0_4 = arith.constant 0 : index
    %c0_5 = arith.constant 0 : index
    %5 = vector.load %arg3[%c0_4, %c0_5] : memref<128x16xf32, #tpu.memory_space<vmem>>, vector<128x16xf32>
    %cst = arith.constant dense<0.000000e+00> : vector<128x16xf32>
    %6 = tpu.matmul %3, %5, %cst {dimension_numbers = #tpu.dot_dimension_numbers<[1], [0], [0], [1], [0, 0, 1, 1], [], []>} : vector<128x128xf32>, vector<128x16xf32>, vector<128x16xf32> -> vector<128x16xf32>
    %7 = arith.addf %4, %6 : vector<128x16xf32>
    %c0_6 = arith.constant 0 : index
    %c0_7 = arith.constant 0 : index
    %8 = vector.load %arg7[%c0_6, %c0_7] : memref<128x16xf32, #tpu.memory_space<vmem>>, vector<128x16xf32>
    tpu.vector_store %arg7[%c0_6, %c0_7], %7 {strides = array<i32>} : memref<128x16xf32, #tpu.memory_space<vmem>>, vector<128x16xf32>,
    %c0_i32_8 = arith.constant 0 : i32
    %9 = arith.cmpi eq, %arg1, %c0_i32_8 : i32
    %10 = arith.extui %9 : i1 to i32
    %c0_i32_9 = arith.constant 0 : i32
    %11 = arith.cmpi ne, %10, %c0_i32_9 : i32
    scf.if %11 {
      %c0_10 = arith.constant 0 : index
      %c0_11 = arith.constant 0 : index
      %12 = vector.load %arg7[%c0_10, %c0_11] : memref<128x16xf32, #tpu.memory_space<vmem>>, vector<128x16xf32>
      %c0_12 = arith.constant 0 : index
      %c0_13 = arith.constant 0 : index
      %13 = vector.load %arg4[%c0_12, %c0_13] : memref<128x1xf32, #tpu.memory_space<vmem>>, vector<128x1xf32>
      %14 = vector.broadcast %13 : vector<128x1xf32> to vector<128x16xf32>
      %15 = arith.mulf %12, %14 : vector<128x16xf32>
      %c0_14 = arith.constant 0 : index
      %c0_15 = arith.constant 0 : index
      %16 = vector.load %arg5[%c0_14, %c0_15] : memref<16x8xf32, #tpu.memory_space<vmem>>, vector<16x8xf32>
      %cst_16 = arith.constant dense<0.000000e+00> : vector<128x8xf32>
      %17 = tpu.matmul %15, %16, %cst_16 {dimension_numbers = #tpu.dot_dimension_numbers<[1], [0], [0], [1], [0, 0, 1, 1], [], []>} : vector<128x16xf32>, vector<16x8xf32>, vector<128x8xf32> -> vector<128x8xf32>
      %c0_17 = arith.constant 0 : index
      %c0_18 = arith.constant 0 : index
      %18 = vector.load %arg6[%c0_17, %c0_18] : memref<128x8xf32, #tpu.memory_space<vmem>>, vector<128x8xf32>
      tpu.vector_store %arg6[%c0_17, %c0_18], %17 {strides = array<i32>} : memref<128x8xf32, #tpu.memory_space<vmem>>, vector<128x8xf32>,
    } else {
    }
    return
  }
  func.func @transform_0(%arg0: i32, %arg1: i32) -> (i32, i32) {
    %c0_i32 = arith.constant 0 : i32
    return %arg0, %arg1 : i32, i32
  }
  func.func @transform_1(%arg0: i32, %arg1: i32) -> (i32, i32) {
    %c0_i32 = arith.constant 0 : i32
    %c0_i32_0 = arith.constant 0 : i32
    return %arg1, %c0_i32 : i32, i32
  }
  func.func @transform_2(%arg0: i32, %arg1: i32) -> (i32, i32) {
    %c0_i32 = arith.constant 0 : i32
    %c0_i32_0 = arith.constant 0 : i32
    return %arg0, %c0_i32 : i32, i32
  }
  func.func @transform_3(%arg0: i32, %arg1: i32) -> (i32, i32) {
    %c0_i32 = arith.constant 0 : i32
    %c0_i32_0 = arith.constant 0 : i32
    %c0_i32_1 = arith.constant 0 : i32
    return %c0_i32, %c0_i32_0 : i32, i32
  }
  func.func @transform_4(%arg0: i32, %arg1: i32) -> (i32, i32) {
    %c0_i32 = arith.constant 0 : i32
    %c0_i32_0 = arith.constant 0 : i32
    return %arg0, %c0_i32 : i32, i32
  }
}

module attributes {stable_mosaic.version = 11 : i64} {
  func.func @kernel(%arg0: i32, %arg1: i32, %arg2: memref<128x128xf32, #tpu.memory_space<vmem>>, %arg3: memref<128x32xf32, #tpu.memory_space<vmem>>, %arg4: memref<128x1xf32, #tpu.memory_space<vmem>>, %arg5: memref<32x16xf32, #tpu.memory_space<vmem>>, %arg6: memref<128x16xf32, #tpu.memory_space<vmem>>, %arg7: memref<128x32xf32, #tpu.memory_space<vmem>>) attributes {dimension_semantics = [#tpu.dimension_semantics<parallel>, #tpu.dimension_semantics<arbitrary>], iteration_bounds = array<i64: 1, 1>, scalar_prefetch = 0 : i64, scratch_operands = 1 : i64, tpu.core_type = #tpu.core_type<tc>, window_params = [{transform_indices = @transform_0, window_bounds = array<i64: 128, 128>}, {transform_indices = @transform_1, window_bounds = array<i64: 128, 32>}, {transform_indices = @transform_2, window_bounds = array<i64: 128, 1>}, {pipeline_mode = #tpu.pipeline_mode<synchronous>, transform_indices = @transform_3, window_bounds = array<i64: 32, 16>}, {transform_indices = @transform_4, window_bounds = array<i64: 128, 16>}]} {
    %c0_i32 = arith.constant 0 : i32
    %0 = arith.cmpi eq, %arg1, %c0_i32 : i32
    %1 = arith.extui %0 : i1 to i32
    %c0_i32_0 = arith.constant 0 : i32
    %2 = arith.cmpi ne, %1, %c0_i32_0 : i32
    scf.if %2 {
      %cst_10 = arith.constant 0.000000e+00 : f32
      %12 = vector.broadcast %cst_10 : f32 to vector<128x32xf32>
      %c0_11 = arith.constant 0 : index
      %c0_12 = arith.constant 0 : index
      %13 = vector.load %arg7[%c0_11, %c0_12] : memref<128x32xf32, #tpu.memory_space<vmem>>, vector<128x32xf32>
      tpu.vector_store %arg7[%c0_11, %c0_12], %12 {strides = array<i32>} : memref<128x32xf32, #tpu.memory_space<vmem>>, vector<128x32xf32>,
    } else {
    }
    %c0 = arith.constant 0 : index
    %c0_1 = arith.constant 0 : index
    %3 = vector.load %arg2[%c0, %c0_1] : memref<128x128xf32, #tpu.memory_space<vmem>>, vector<128x128xf32>
    %c0_2 = arith.constant 0 : index
    %c0_3 = arith.constant 0 : index
    %4 = vector.load %arg7[%c0_2, %c0_3] : memref<128x32xf32, #tpu.memory_space<vmem>>, vector<128x32xf32>
    %c0_4 = arith.constant 0 : index
    %c0_5 = arith.constant 0 : index
    %5 = vector.load %arg3[%c0_4, %c0_5] : memref<128x32xf32, #tpu.memory_space<vmem>>, vector<128x32xf32>
    %cst = arith.constant dense<0.000000e+00> : vector<128x32xf32>
    %6 = tpu.matmul %3, %5, %cst {dimension_numbers = #tpu.dot_dimension_numbers<[1], [0], [0], [1], [0, 0, 1, 1], [], []>} : vector<128x128xf32>, vector<128x32xf32>, vector<128x32xf32> -> vector<128x32xf32>
    %7 = arith.addf %4, %6 : vector<128x32xf32>
    %c0_6 = arith.constant 0 : index
    %c0_7 = arith.constant 0 : index
    %8 = vector.load %arg7[%c0_6, %c0_7] : memref<128x32xf32, #tpu.memory_space<vmem>>, vector<128x32xf32>
    tpu.vector_store %arg7[%c0_6, %c0_7], %7 {strides = array<i32>} : memref<128x32xf32, #tpu.memory_space<vmem>>, vector<128x32xf32>,
    %c0_i32_8 = arith.constant 0 : i32
    %9 = arith.cmpi eq, %arg1, %c0_i32_8 : i32
    %10 = arith.extui %9 : i1 to i32
    %c0_i32_9 = arith.constant 0 : i32
    %11 = arith.cmpi ne, %10, %c0_i32_9 : i32
    scf.if %11 {
      %c0_10 = arith.constant 0 : index
      %c0_11 = arith.constant 0 : index
      %12 = vector.load %arg7[%c0_10, %c0_11] : memref<128x32xf32, #tpu.memory_space<vmem>>, vector<128x32xf32>
      %c0_12 = arith.constant 0 : index
      %c0_13 = arith.constant 0 : index
      %13 = vector.load %arg4[%c0_12, %c0_13] : memref<128x1xf32, #tpu.memory_space<vmem>>, vector<128x1xf32>
      %14 = vector.broadcast %13 : vector<128x1xf32> to vector<128x32xf32>
      %15 = arith.mulf %12, %14 : vector<128x32xf32>
      %c0_14 = arith.constant 0 : index
      %c0_15 = arith.constant 0 : index
      %16 = vector.load %arg5[%c0_14, %c0_15] : memref<32x16xf32, #tpu.memory_space<vmem>>, vector<32x16xf32>
      %cst_16 = arith.constant dense<0.000000e+00> : vector<128x16xf32>
      %17 = tpu.matmul %15, %16, %cst_16 {dimension_numbers = #tpu.dot_dimension_numbers<[1], [0], [0], [1], [0, 0, 1, 1], [], []>} : vector<128x32xf32>, vector<32x16xf32>, vector<128x16xf32> -> vector<128x16xf32>
      %18 = math.tanh %17 : vector<128x16xf32>
      %c0_17 = arith.constant 0 : index
      %c0_18 = arith.constant 0 : index
      %19 = vector.load %arg6[%c0_17, %c0_18] : memref<128x16xf32, #tpu.memory_space<vmem>>, vector<128x16xf32>
      tpu.vector_store %arg6[%c0_17, %c0_18], %18 {strides = array<i32>} : memref<128x16xf32, #tpu.memory_space<vmem>>, vector<128x16xf32>,
    } else {
    }
    return
  }
  func.func @transform_0(%arg0: i32, %arg1: i32) -> (i32, i32) {
    %c0_i32 = arith.constant 0 : i32
    return %arg0, %arg1 : i32, i32
  }
  func.func @transform_1(%arg0: i32, %arg1: i32) -> (i32, i32) {
    %c0_i32 = arith.constant 0 : i32
    %c0_i32_0 = arith.constant 0 : i32
    return %arg1, %c0_i32 : i32, i32
  }
  func.func @transform_2(%arg0: i32, %arg1: i32) -> (i32, i32) {
    %c0_i32 = arith.constant 0 : i32
    %c0_i32_0 = arith.constant 0 : i32
    return %arg0, %c0_i32 : i32, i32
  }
  func.func @transform_3(%arg0: i32, %arg1: i32) -> (i32, i32) {
    %c0_i32 = arith.constant 0 : i32
    %c0_i32_0 = arith.constant 0 : i32
    %c0_i32_1 = arith.constant 0 : i32
    return %c0_i32, %c0_i32_0 : i32, i32
  }
  func.func @transform_4(%arg0: i32, %arg1: i32) -> (i32, i32) {
    %c0_i32 = arith.constant 0 : i32
    %c0_i32_0 = arith.constant 0 : i32
    return %arg0, %c0_i32 : i32, i32
  }
}

module attributes {stable_mosaic.version = 11 : i64} {
  func.func @kernel(%arg0: i32, %arg1: i32, %arg2: memref<128x128xf32, #tpu.memory_space<vmem>>, %arg3: memref<128x8xf32, #tpu.memory_space<vmem>>, %arg4: memref<128x1xf32, #tpu.memory_space<vmem>>, %arg5: memref<128x8xf32, #tpu.memory_space<vmem>>, %arg6: memref<128x8xf32, #tpu.memory_space<vmem>>) attributes {dimension_semantics = [#tpu.dimension_semantics<parallel>, #tpu.dimension_semantics<arbitrary>], iteration_bounds = array<i64: 1, 1>, scalar_prefetch = 0 : i64, scratch_operands = 1 : i64, tpu.core_type = #tpu.core_type<tc>, window_params = [{transform_indices = @transform_0, window_bounds = array<i64: 128, 128>}, {transform_indices = @transform_1, window_bounds = array<i64: 128, 8>}, {transform_indices = @transform_2, window_bounds = array<i64: 128, 1>}, {transform_indices = @transform_3, window_bounds = array<i64: 128, 8>}]} {
    %c0_i32 = arith.constant 0 : i32
    %0 = arith.cmpi eq, %arg1, %c0_i32 : i32
    %1 = arith.extui %0 : i1 to i32
    %c0_i32_0 = arith.constant 0 : i32
    %2 = arith.cmpi ne, %1, %c0_i32_0 : i32
    scf.if %2 {
      %cst_10 = arith.constant 0.000000e+00 : f32
      %12 = vector.broadcast %cst_10 : f32 to vector<128x8xf32>
      %c0_11 = arith.constant 0 : index
      %c0_12 = arith.constant 0 : index
      %13 = vector.load %arg6[%c0_11, %c0_12] : memref<128x8xf32, #tpu.memory_space<vmem>>, vector<128x8xf32>
      tpu.vector_store %arg6[%c0_11, %c0_12], %12 {strides = array<i32>} : memref<128x8xf32, #tpu.memory_space<vmem>>, vector<128x8xf32>,
    } else {
    }
    %c0 = arith.constant 0 : index
    %c0_1 = arith.constant 0 : index
    %3 = vector.load %arg2[%c0, %c0_1] : memref<128x128xf32, #tpu.memory_space<vmem>>, vector<128x128xf32>
    %c0_2 = arith.constant 0 : index
    %c0_3 = arith.constant 0 : index
    %4 = vector.load %arg6[%c0_2, %c0_3] : memref<128x8xf32, #tpu.memory_space<vmem>>, vector<128x8xf32>
    %c0_4 = arith.constant 0 : index
    %c0_5 = arith.constant 0 : index
    %5 = vector.load %arg3[%c0_4, %c0_5] : memref<128x8xf32, #tpu.memory_space<vmem>>, vector<128x8xf32>
    %cst = arith.constant dense<0.000000e+00> : vector<128x8xf32>
    %6 = tpu.matmul %3, %5, %cst {dimension_numbers = #tpu.dot_dimension_numbers<[1], [0], [0], [1], [0, 0, 1, 1], [], []>} : vector<128x128xf32>, vector<128x8xf32>, vector<128x8xf32> -> vector<128x8xf32>
    %7 = arith.addf %4, %6 : vector<128x8xf32>
    %c0_6 = arith.constant 0 : index
    %c0_7 = arith.constant 0 : index
    %8 = vector.load %arg6[%c0_6, %c0_7] : memref<128x8xf32, #tpu.memory_space<vmem>>, vector<128x8xf32>
    tpu.vector_store %arg6[%c0_6, %c0_7], %7 {strides = array<i32>} : memref<128x8xf32, #tpu.memory_space<vmem>>, vector<128x8xf32>,
    %c0_i32_8 = arith.constant 0 : i32
    %9 = arith.cmpi eq, %arg1, %c0_i32_8 : i32
    %10 = arith.extui %9 : i1 to i32
    %c0_i32_9 = arith.constant 0 : i32
    %11 = arith.cmpi ne, %10, %c0_i32_9 : i32
    scf.if %11 {
      %c0_10 = arith.constant 0 : index
      %c0_11 = arith.constant 0 : index
      %12 = vector.load %arg6[%c0_10, %c0_11] : memref<128x8xf32, #tpu.memory_space<vmem>>, vector<128x8xf32>
      %c0_12 = arith.constant 0 : index
      %c0_13 = arith.constant 0 : index
      %13 = vector.load %arg4[%c0_12, %c0_13] : memref<128x1xf32, #tpu.memory_space<vmem>>, vector<128x1xf32>
      %14 = vector.broadcast %13 : vector<128x1xf32> to vector<128x8xf32>
      %15 = arith.mulf %12, %14 : vector<128x8xf32>
      %c0_14 = arith.constant 0 : index
      %c0_15 = arith.constant 0 : index
      %16 = vector.load %arg5[%c0_14, %c0_15] : memref<128x8xf32, #tpu.memory_space<vmem>>, vector<128x8xf32>
      tpu.vector_store %arg5[%c0_14, %c0_15], %15 {strides = array<i32>} : memref<128x8xf32, #tpu.memory_space<vmem>>, vector<128x8xf32>,
    } else {
    }
    return
  }
  func.func @transform_0(%arg0: i32, %arg1: i32) -> (i32, i32) {
    %c0_i32 = arith.constant 0 : i32
    return %arg0, %arg1 : i32, i32
  }
  func.func @transform_1(%arg0: i32, %arg1: i32) -> (i32, i32) {
    %c0_i32 = arith.constant 0 : i32
    %c0_i32_0 = arith.constant 0 : i32
    return %arg1, %c0_i32 : i32, i32
  }
  func.func @transform_2(%arg0: i32, %arg1: i32) -> (i32, i32) {
    %c0_i32 = arith.constant 0 : i32
    %c0_i32_0 = arith.constant 0 : i32
    return %arg0, %c0_i32 : i32, i32
  }
  func.func @transform_3(%arg0: i32, %arg1: i32) -> (i32, i32) {
    %c0_i32 = arith.constant 0 : i32
    %c0_i32_0 = arith.constant 0 : i32
    return %arg0, %c0_i32 : i32, i32
  }
}

</mosaic_0001>

<llo_original>
// kernel: igae_encoder.5
$region0: #{igae_encoder.5}
  #allocation0 [shape = 'u32[]', space=smem, size = 0x4, offset = 0x4, fixed_abs, tag = 'smem constant byte address 0x4 - core index']
  #allocation1 [shape = 'u32[144,128]{1,0:T(1,128)}', space=vmem, size = 0x12000, scoped, tag = 'internal scratch']
  #allocation2 [shape = 'f32[128,8]{1,0:T(8,128)}', space=vmem, size = 0x10000, scoped, tag = 'scratch operand']
  %s0 = inlined_call_operand.vmem [shape: f32[128,128], index: 0, kind: input, shape index: {}]
  %s1 = inlined_call_operand.vmem [shape: f32[128,8], index: 1, kind: input, shape index: {}]
  %s2 = inlined_call_operand.vmem [shape: f32[128,1], index: 2, kind: input, shape index: {}]
  %s3 = inlined_call_operand.vmem [shape: f32[128,8], index: 3, kind: output, shape index: {}]
  %s4 = sld [smem:[#allocation0]]
  $region30: #{igae_encoder.5} parent=0
    _
  %s6 = ssub.s32 1, %s4
  %s7 = scalar_select 0, %s6, %s4
  // Predicated region
  $region2: #{igae_encoder.5} parent=0 // pred_check
    _
  $region3: #{igae_encoder.5} parent=0 // pred_check_branch
    %9 = sbr.rel (0) target = $region5
  $region4: #{igae_encoder.5} parent=0 // pred_region
    _
  $region5: #{igae_encoder.5} parent=0 // pred_fallthru
    _
  // Predicated region
  $region6: #{igae_encoder.5} parent=0 // pred_check
    _
  $region7: #{igae_encoder.5} parent=0 // pred_check_branch
    %11 = sbr.rel (0) target = $region9
  $region8: #{igae_encoder.5} parent=0 // pred_region
    _
  $region9: #{igae_encoder.5} parent=0 // pred_fallthru
    _
  // Predicated region
  $region10: #{igae_encoder.5} parent=0 // pred_check
    _
  $region11: #{igae_encoder.5} parent=0 // pred_check_branch
    %13 = sbr.rel (0) target = $region13
  $region12: #{igae_encoder.5} parent=0 // pred_region
    _
  $region13: #{igae_encoder.5} parent=0 // pred_fallthru
    _
  %p14 = scmp.eq.s32.totalorder 0, 0
  // Predicated region
  $region14: #{igae_encoder.5} parent=0 // pred_check
    %p15 = pneg %p14
  $region15: #{igae_encoder.5} parent=0 // pred_check_branch
    %17 = sbr.rel (%p15) target = $region17
  $region16: #{igae_encoder.5} parent=0 // pred_region
    %vm18 = vcmask 64512
    %19 = vst.msk [vmem:[#allocation2] sm:$0xff] %vm18, 0.0
    %20 = vst.msk [vmem:[#allocation2 + $0x8] sm:$0xff] %vm18, 0.0
    %21 = vst.msk [vmem:[#allocation2 + $0x10] sm:$0xff] %vm18, 0.0
    %22 = vst.msk [vmem:[#allocation2 + $0x18] sm:$0xff] %vm18, 0.0
    %23 = vst.msk [vmem:[#allocation2 + $0x20] sm:$0xff] %vm18, 0.0
    %24 = vst.msk [vmem:[#allocation2 + $0x28] sm:$0xff] %vm18, 0.0
    %25 = vst.msk [vmem:[#allocation2 + $0x30] sm:$0xff] %vm18, 0.0
    %26 = vst.msk [vmem:[#allocation2 + $0x38] sm:$0xff] %vm18, 0.0
    %27 = vst.msk [vmem:[#allocation2 + $0x40] sm:$0xff] %vm18, 0.0
    %28 = vst.msk [vmem:[#allocation2 + $0x48] sm:$0xff] %vm18, 0.0
    %29 = vst.msk [vmem:[#allocation2 + $0x50] sm:$0xff] %vm18, 0.0
    %30 = vst.msk [vmem:[#allocation2 + $0x58] sm:$0xff] %vm18, 0.0
    %31 = vst.msk [vmem:[#allocation2 + $0x60] sm:$0xff] %vm18, 0.0
    %32 = vst.msk [vmem:[#allocation2 + $0x68] sm:$0xff] %vm18, 0.0
    %33 = vst.msk [vmem:[#allocation2 + $0x70] sm:$0xff] %vm18, 0.0
    %34 = vst.msk [vmem:[#allocation2 + $0x78] sm:$0xff] %vm18, 0.0
  $region17: #{igae_encoder.5} parent=0 // pred_fallthru
    _
  %v35 = vld [vmem:[%s0] sm:$0xff]
  %v36 = vld [vmem:[%s0 + $0x8] sm:$0xff]
  %v37 = vld [vmem:[%s0 + $0x10] sm:$0xff]
  %v38 = vld [vmem:[%s0 + $0x18] sm:$0xff]
  %v39 = vld [vmem:[%s0 + $0x20] sm:$0xff]
  %v40 = vld [vmem:[%s0 + $0x28] sm:$0xff]
  %v41 = vld [vmem:[%s0 + $0x30] sm:$0xff]
  %v42 = vld [vmem:[%s0 + $0x38] sm:$0xff]
  %v43 = vld [vmem:[%s0 + $0x40] sm:$0xff]
  %v44 = vld [vmem:[%s0 + $0x48] sm:$0xff]
  %v45 = vld [vmem:[%s0 + $0x50] sm:$0xff]
  %v46 = vld [vmem:[%s0 + $0x58] sm:$0xff]
  %v47 = vld [vmem:[%s0 + $0x60] sm:$0xff]
  %v48 = vld [vmem:[%s0 + $0x68] sm:$0xff]
  %v49 = vld [vmem:[%s0 + $0x70] sm:$0xff]
  %v50 = vld [vmem:[%s0 + $0x78] sm:$0xff]
  %v51 = vld [vmem:[#allocation2] sm:$0xff]
  %v52 = vld [vmem:[#allocation2 + $0x8] sm:$0xff]
  %v53 = vld [vmem:[#allocation2 + $0x10] sm:$0xff]
  %v54 = vld [vmem:[#allocation2 + $0x18] sm:$0xff]
  %v55 = vld [vmem:[#allocation2 + $0x20] sm:$0xff]
  %v56 = vld [vmem:[#allocation2 + $0x28] sm:$0xff]
  %v57 = vld [vmem:[#allocation2 + $0x30] sm:$0xff]
  %v58 = vld [vmem:[#allocation2 + $0x38] sm:$0xff]
  %v59 = vld [vmem:[#allocation2 + $0x40] sm:$0xff]
  %v60 = vld [vmem:[#allocation2 + $0x48] sm:$0xff]
  %v61 = vld [vmem:[#allocation2 + $0x50] sm:$0xff]
  %v62 = vld [vmem:[#allocation2 + $0x58] sm:$0xff]
  %v63 = vld [vmem:[#allocation2 + $0x60] sm:$0xff]
  %v64 = vld [vmem:[#allocation2 + $0x68] sm:$0xff]
  %v65 = vld [vmem:[#allocation2 + $0x70] sm:$0xff]
  %v66 = vld [vmem:[#allocation2 + $0x78] sm:$0xff]
  %v67 = vld [vmem:[%s1] sm:$0xff]
  %v68 = vld [vmem:[%s1 + $0x8] sm:$0xff]
  %v69 = vld [vmem:[%s1 + $0x10] sm:$0xff]
  %v70 = vld [vmem:[%s1 + $0x18] sm:$0xff]
  %v71 = vld [vmem:[%s1 + $0x20] sm:$0xff]
  %v72 = vld [vmem:[%s1 + $0x28] sm:$0xff]
  %v73 = vld [vmem:[%s1 + $0x30] sm:$0xff]
  %v74 = vld [vmem:[%s1 + $0x38] sm:$0xff]
  %v75 = vld [vmem:[%s1 + $0x40] sm:$0xff]
  %v76 = vld [vmem:[%s1 + $0x48] sm:$0xff]
  %v77 = vld [vmem:[%s1 + $0x50] sm:$0xff]
  %v78 = vld [vmem:[%s1 + $0x58] sm:$0xff]
  %v79 = vld [vmem:[%s1 + $0x60] sm:$0xff]
  %v80 = vld [vmem:[%s1 + $0x68] sm:$0xff]
  %v81 = vld [vmem:[%s1 + $0x70] sm:$0xff]
  %v82 = vld [vmem:[%s1 + $0x78] sm:$0xff]
  %83 = vmatprep.subr.mxu0 0.0
  %84 = vmatpush1.msra.mxu0 %v67
  %85 = vmatprep.subr.mxu0 0.0
  %86 = vmatpush1.msra.mxu0 %v68
  %87 = vmatprep.subr.mxu0 0.0
  %88 = vmatpush1.msra.mxu0 %v69
  %89 = vmatprep.subr.mxu0 0.0
  %90 = vmatpush1.msra.mxu0 %v70
  %91 = vmatprep.subr.mxu0 0.0
  %92 = vmatpush1.msra.mxu0 %v71
  %93 = vmatprep.subr.mxu0 0.0
  %94 = vmatpush1.msra.mxu0 %v72
  %95 = vmatprep.subr.mxu0 0.0
  %96 = vmatpush1.msra.mxu0 %v73
  %97 = vmatprep.subr.mxu0 0.0
  %98 = vmatpush1.msra.mxu0 %v74
  %99 = vmatprep.subr.mxu0 0.0
  %100 = vmatpush1.msra.mxu0 %v75
  %101 = vmatprep.subr.mxu0 0.0
  %102 = vmatpush1.msra.mxu0 %v76
  %103 = vmatprep.subr.mxu0 0.0
  %104 = vmatpush1.msra.mxu0 %v77
  %105 = vmatprep.subr.mxu0 0.0
  %106 = vmatpush1.msra.mxu0 %v78
  %107 = vmatprep.subr.mxu0 0.0
  %108 = vmatpush1.msra.mxu0 %v79
  %109 = vmatprep.subr.mxu0 0.0
  %110 = vmatpush1.msra.mxu0 %v80
  %111 = vmatprep.subr.mxu0 0.0
  %112 = vmatpush1.msra.mxu0 %v81
  %113 = vmatprep.subr.mxu0 0.0
  %114 = vmatpush1.msra.mxu0 %v82
  %115 = vmatprep.subr.mxu0 0.0
  %116 = vmatpush1.msra.mxu0 0.0
  %117 = vmatprep.subr.mxu0 0.0
  %118 = vmatpush1.msra.mxu0 0.0
  %119 = vmatprep.subr.mxu0 0.0
  %120 = vmatpush1.msra.mxu0 0.0
  %121 = vmatprep.subr.mxu0 0.0
  %122 = vmatpush1.msra.mxu0 0.0
  %123 = vmatprep.subr.mxu0 0.0
  %124 = vmatpush1.msra.mxu0 0.0
  %125 = vmatprep.subr.mxu0 0.0
  %126 = vmatpush1.msra.mxu0 0.0
  %127 = vmatprep.subr.mxu0 0.0
  %128 = vmatpush1.msra.mxu0 0.0
  %129 = vmatprep.subr.mxu0 0.0
  %130 = vmatpush1.msra.mxu0 0.0
  %131 = vmatprep.subr.mxu0 0.0
  %132 = vmatpush1.msra.mxu0 0.0
  %133 = vmatprep.subr.mxu0 0.0
  %134 = vmatpush1.msra.mxu0 0.0
  %135 = vmatprep.subr.mxu0 0.0
  %136 = vmatpush1.msra.mxu0 0.0
  %137 = vmatprep.subr.mxu0 0.0
  %138 = vmatpush1.msra.mxu0 0.0
  %139 = vmatprep.subr.mxu0 0.0
  %140 = vmatpush1.msra.mxu0 0.0
  %141 = vmatprep.subr.mxu0 0.0
  %142 = vmatpush1.msra.mxu0 0.0
  %143 = vmatprep.subr.mxu0 0.0
  %144 = vmatpush1.msra.mxu0 0.0
  %145 = vmatprep.subr.mxu0 0.0
  %146 = vmatpush1.msra.mxu0 0.0
  %147 = vmatprep.mubr.f32.mxu0 0.0
  %148 = vmatmul.mubr.f32.gmra.mrb[0].mxu0 %v35
  %v149 = vpop.f32.mrb[0].mxu0
  %v150 = vadd.f32 0.0, %v149
  %v151 = vpop.f32.mrb[0].mxu0
  %152 = vmatprep.mubr.f32.mxu0 0.0
  %153 = vmatmul.mubr.f32.gmra.mrb[0].mxu0 %v36
  %v154 = vpop.f32.mrb[0].mxu0
  %v155 = vadd.f32 0.0, %v154
  %v156 = vpop.f32.mrb[0].mxu0
  %157 = vmatprep.mubr.f32.mxu0 0.0
  %158 = vmatmul.mubr.f32.gmra.mrb[0].mxu0 %v37
  %v159 = vpop.f32.mrb[0].mxu0
  %v160 = vadd.f32 0.0, %v159
  %v161 = vpop.f32.mrb[0].mxu0
  %162 = vmatprep.mubr.f32.mxu0 0.0
  %163 = vmatmul.mubr.f32.gmra.mrb[0].mxu0 %v38
  %v164 = vpop.f32.mrb[0].mxu0
  %v165 = vadd.f32 0.0, %v164
  %v166 = vpop.f32.mrb[0].mxu0
  %167 = vmatprep.mubr.f32.mxu0 0.0
  %168 = vmatmul.mubr.f32.gmra.mrb[0].mxu0 %v39
  %v169 = vpop.f32.mrb[0].mxu0
  %v170 = vadd.f32 0.0, %v169
  %v171 = vpop.f32.mrb[0].mxu0
  %172 = vmatprep.mubr.f32.mxu0 0.0
  %173 = vmatmul.mubr.f32.gmra.mrb[0].mxu0 %v40
  %v174 = vpop.f32.mrb[0].mxu0
  %v175 = vadd.f32 0.0, %v174
  %v176 = vpop.f32.mrb[0].mxu0
  %177 = vmatprep.mubr.f32.mxu0 0.0
  %178 = vmatmul.mubr.f32.gmra.mrb[0].mxu0 %v41
  %v179 = vpop.f32.mrb[0].mxu0
  %v180 = vadd.f32 0.0, %v179
  %v181 = vpop.f32.mrb[0].mxu0
  %182 = vmatprep.mubr.f32.mxu0 0.0
  %183 = vmatmul.mubr.f32.gmra.mrb[0].mxu0 %v42
  %v184 = vpop.f32.mrb[0].mxu0
  %v185 = vadd.f32 0.0, %v184
  %v186 = vpop.f32.mrb[0].mxu0
  %187 = vmatprep.mubr.f32.mxu0 0.0
  %188 = vmatmul.mubr.f32.gmra.mrb[0].mxu0 %v43
  %v189 = vpop.f32.mrb[0].mxu0
  %v190 = vadd.f32 0.0, %v189
  %v191 = vpop.f32.mrb[0].mxu0
  %192 = vmatprep.mubr.f32.mxu0 0.0
  %193 = vmatmul.mubr.f32.gmra.mrb[0].mxu0 %v44
  %v194 = vpop.f32.mrb[0].mxu0
  %v195 = vadd.f32 0.0, %v194
  %v196 = vpop.f32.mrb[0].mxu0
  %197 = vmatprep.mubr.f32.mxu0 0.0
  %198 = vmatmul.mubr.f32.gmra.mrb[0].mxu0 %v45
  %v199 = vpop.f32.mrb[0].mxu0
  %v200 = vadd.f32 0.0, %v199
  %v201 = vpop.f32.mrb[0].mxu0
  %202 = vmatprep.mubr.f32.mxu0 0.0
  %203 = vmatmul.mubr.f32.gmra.mrb[0].mxu0 %v46
  %v204 = vpop.f32.mrb[0].mxu0
  %v205 = vadd.f32 0.0, %v204
  %v206 = vpop.f32.mrb[0].mxu0
  %207 = vmatprep.mubr.f32.mxu0 0.0
  %208 = vmatmul.mubr.f32.gmra.mrb[0].mxu0 %v47
  %v209 = vpop.f32.mrb[0].mxu0
  %v210 = vadd.f32 0.0, %v209
  %v211 = vpop.f32.mrb[0].mxu0
  %212 = vmatprep.mubr.f32.mxu0 0.0
  %213 = vmatmul.mubr.f32.gmra.mrb[0].mxu0 %v48
  %v214 = vpop.f32.mrb[0].mxu0
  %v215 = vadd.f32 0.0, %v214
  %v216 = vpop.f32.mrb[0].mxu0
  %217 = vmatprep.mubr.f32.mxu0 0.0
  %218 = vmatmul.mubr.f32.gmra.mrb[0].mxu0 %v49
  %v219 = vpop.f32.mrb[0].mxu0
  %v220 = vadd.f32 0.0, %v219
  %v221 = vpop.f32.mrb[0].mxu0
  %222 = vmatprep.mubr.f32.mxu0 0.0
  %223 = vmatmul.mubr.f32.gmra.mrb[0].mxu0 %v50
  %v224 = vpop.f32.mrb[0].mxu0
  %v225 = vadd.f32 0.0, %v224
  %v226 = vpop.f32.mrb[0].mxu0
  %227 = vdwg.mxu0
  %v228 = vadd.f32 %v51, %v150
  %v229 = vadd.f32 %v52, %v155
  %v230 = vadd.f32 %v53, %v160
  %v231 = vadd.f32 %v54, %v165
  %v232 = vadd.f32 %v55, %v170
  %v233 = vadd.f32 %v56, %v175
  %v234 = vadd.f32 %v57, %v180
  %v235 = vadd.f32 %v58, %v185
  %v236 = vadd.f32 %v59, %v190
  %v237 = vadd.f32 %v60, %v195
  %v238 = vadd.f32 %v61, %v200
  %v239 = vadd.f32 %v62, %v205
  %v240 = vadd.f32 %v63, %v210
  %v241 = vadd.f32 %v64, %v215
  %v242 = vadd.f32 %v65, %v220
  %v243 = vadd.f32 %v66, %v225
  %vm244 = vcmask 64512
  %245 = vst.msk [vmem:[#allocation2] sm:$0xff] %vm244, %v228
  %246 = vst.msk [vmem:[#allocation2 + $0x8] sm:$0xff] %vm244, %v229
  %247 = vst.msk [vmem:[#allocation2 + $0x10] sm:$0xff] %vm244, %v230
  %248 = vst.msk [vmem:[#allocation2 + $0x18] sm:$0xff] %vm244, %v231
  %249 = vst.msk [vmem:[#allocation2 + $0x20] sm:$0xff] %vm244, %v232
  %250 = vst.msk [vmem:[#allocation2 + $0x28] sm:$0xff] %vm244, %v233
  %251 = vst.msk [vmem:[#allocation2 + $0x30] sm:$0xff] %vm244, %v234
  %252 = vst.msk [vmem:[#allocation2 + $0x38] sm:$0xff] %vm244, %v235
  %253 = vst.msk [vmem:[#allocation2 + $0x40] sm:$0xff] %vm244, %v236
  %254 = vst.msk [vmem:[#allocation2 + $0x48] sm:$0xff] %vm244, %v237
  %255 = vst.msk [vmem:[#allocation2 + $0x50] sm:$0xff] %vm244, %v238
  %256 = vst.msk [vmem:[#allocation2 + $0x58] sm:$0xff] %vm244, %v239
  %257 = vst.msk [vmem:[#allocation2 + $0x60] sm:$0xff] %vm244, %v240
  %258 = vst.msk [vmem:[#allocation2 + $0x68] sm:$0xff] %vm244, %v241
  %259 = vst.msk [vmem:[#allocation2 + $0x70] sm:$0xff] %vm244, %v242
  %260 = vst.msk [vmem:[#allocation2 + $0x78] sm:$0xff] %vm244, %v243
  // Predicated region
  $region18: #{igae_encoder.5} parent=0 // pred_check
    %p261 = pneg %p14
  $region19: #{igae_encoder.5} parent=0 // pred_check_branch
    %263 = sbr.rel (%p261) target = $region21
  $region20: #{igae_encoder.5} parent=0 // pred_region
    %v264 = vld [vmem:[#allocation2] sm:$0xff]
    %v265 = vld [vmem:[#allocation2 + $0x8] sm:$0xff]
    %v266 = vld [vmem:[#allocation2 + $0x10] sm:$0xff]
    %v267 = vld [vmem:[#allocation2 + $0x18] sm:$0xff]
    %v268 = vld [vmem:[#allocation2 + $0x20] sm:$0xff]
    %v269 = vld [vmem:[#allocation2 + $0x28] sm:$0xff]
    %v270 = vld [vmem:[#allocation2 + $0x30] sm:$0xff]
    %v271 = vld [vmem:[#allocation2 + $0x38] sm:$0xff]
    %v272 = vld [vmem:[#allocation2 + $0x40] sm:$0xff]
    %v273 = vld [vmem:[#allocation2 + $0x48] sm:$0xff]
    %v274 = vld [vmem:[#allocation2 + $0x50] sm:$0xff]
    %v275 = vld [vmem:[#allocation2 + $0x58] sm:$0xff]
    %v276 = vld [vmem:[#allocation2 + $0x60] sm:$0xff]
    %v277 = vld [vmem:[#allocation2 + $0x68] sm:$0xff]
    %v278 = vld [vmem:[#allocation2 + $0x70] sm:$0xff]
    %v279 = vld [vmem:[#allocation2 + $0x78] sm:$0xff]
    %v280 = vld [vmem:[%s2] sm:$0xff]
    %v281 = vld [vmem:[%s2 + $0x8] sm:$0xff]
    %v282 = vld [vmem:[%s2 + $0x10] sm:$0xff]
    %v283 = vld [vmem:[%s2 + $0x18] sm:$0xff]
    %v284 = vld [vmem:[%s2 + $0x20] sm:$0xff]
    %v285 = vld [vmem:[%s2 + $0x28] sm:$0xff]
    %v286 = vld [vmem:[%s2 + $0x30] sm:$0xff]
    %v287 = vld [vmem:[%s2 + $0x38] sm:$0xff]
    %v288 = vld [vmem:[%s2 + $0x40] sm:$0xff]
    %v289 = vld [vmem:[%s2 + $0x48] sm:$0xff]
    %v290 = vld [vmem:[%s2 + $0x50] sm:$0xff]
    %v291 = vld [vmem:[%s2 + $0x58] sm:$0xff]
    %v292 = vld [vmem:[%s2 + $0x60] sm:$0xff]
    %v293 = vld [vmem:[%s2 + $0x68] sm:$0xff]
    %v294 = vld [vmem:[%s2 + $0x70] sm:$0xff]
    %v295 = vld [vmem:[%s2 + $0x78] sm:$0xff]
    %297 = vset.pattern.permute.xlu0 0
    %298 = vperm.xlu0 %297, %v280
    %v299 = vpop.permute.xlu0 %298
    %302 = vset.pattern.permute.xlu0 0
    %303 = vperm.xlu0 %302, %v281
    %v304 = vpop.permute.xlu0 %303
    %307 = vset.pattern.permute.xlu0 0
    %308 = vperm.xlu0 %307, %v282
    %v309 = vpop.permute.xlu0 %308
    %312 = vset.pattern.permute.xlu0 0
    %313 = vperm.xlu0 %312, %v283
    %v314 = vpop.permute.xlu0 %313
    %317 = vset.pattern.permute.xlu0 0
    %318 = vperm.xlu0 %317, %v284
    %v319 = vpop.permute.xlu0 %318
    %322 = vset.pattern.permute.xlu0 0
    %323 = vperm.xlu0 %322, %v285
    %v324 = vpop.permute.xlu0 %323
    %327 = vset.pattern.permute.xlu0 0
    %328 = vperm.xlu0 %327, %v286
    %v329 = vpop.permute.xlu0 %328
    %332 = vset.pattern.permute.xlu0 0
    %333 = vperm.xlu0 %332, %v287
    %v334 = vpop.permute.xlu0 %333
    %337 = vset.pattern.permute.xlu0 0
    %338 = vperm.xlu0 %337, %v288
    %v339 = vpop.permute.xlu0 %338
    %342 = vset.pattern.permute.xlu0 0
    %343 = vperm.xlu0 %342, %v289
    %v344 = vpop.permute.xlu0 %343
    %347 = vset.pattern.permute.xlu0 0
    %348 = vperm.xlu0 %347, %v290
    %v349 = vpop.permute.xlu0 %348
    %352 = vset.pattern.permute.xlu0 0
    %353 = vperm.xlu0 %352, %v291
    %v354 = vpop.permute.xlu0 %353
    %357 = vset.pattern.permute.xlu0 0
    %358 = vperm.xlu0 %357, %v292
    %v359 = vpop.permute.xlu0 %358
    %362 = vset.pattern.permute.xlu0 0
    %363 = vperm.xlu0 %362, %v293
    %v364 = vpop.permute.xlu0 %363
    %367 = vset.pattern.permute.xlu0 0
    %368 = vperm.xlu0 %367, %v294
    %v369 = vpop.permute.xlu0 %368
    %372 = vset.pattern.permute.xlu0 0
    %373 = vperm.xlu0 %372, %v295
    %v374 = vpop.permute.xlu0 %373
    %v376 = vmul.f32 %v264, %v299
    %v377 = vmul.f32 %v265, %v304
    %v378 = vmul.f32 %v266, %v309
    %v379 = vmul.f32 %v267, %v314
    %v380 = vmul.f32 %v268, %v319
    %v381 = vmul.f32 %v269, %v324
    %v382 = vmul.f32 %v270, %v329
    %v383 = vmul.f32 %v271, %v334
    %v384 = vmul.f32 %v272, %v339
    %v385 = vmul.f32 %v273, %v344
    %v386 = vmul.f32 %v274, %v349
    %v387 = vmul.f32 %v275, %v354
    %v388 = vmul.f32 %v276, %v359
    %v389 = vmul.f32 %v277, %v364
    %v390 = vmul.f32 %v278, %v369
    %v391 = vmul.f32 %v279, %v374
    %392 = vst.msk [vmem:[%s3] sm:$0xff] %vm244, %v376
    %393 = vst.msk [vmem:[%s3 + $0x8] sm:$0xff] %vm244, %v377
    %394 = vst.msk [vmem:[%s3 + $0x10] sm:$0xff] %vm244, %v378
    %395 = vst.msk [vmem:[%s3 + $0x18] sm:$0xff] %vm244, %v379
    %396 = vst.msk [vmem:[%s3 + $0x20] sm:$0xff] %vm244, %v380
    %397 = vst.msk [vmem:[%s3 + $0x28] sm:$0xff] %vm244, %v381
    %398 = vst.msk [vmem:[%s3 + $0x30] sm:$0xff] %vm244, %v382
    %399 = vst.msk [vmem:[%s3 + $0x38] sm:$0xff] %vm244, %v383
    %400 = vst.msk [vmem:[%s3 + $0x40] sm:$0xff] %vm244, %v384
    %401 = vst.msk [vmem:[%s3 + $0x48] sm:$0xff] %vm244, %v385
    %402 = vst.msk [vmem:[%s3 + $0x50] sm:$0xff] %vm244, %v386
    %403 = vst.msk [vmem:[%s3 + $0x58] sm:$0xff] %vm244, %v387
    %404 = vst.msk [vmem:[%s3 + $0x60] sm:$0xff] %vm244, %v388
    %405 = vst.msk [vmem:[%s3 + $0x68] sm:$0xff] %vm244, %v389
    %406 = vst.msk [vmem:[%s3 + $0x70] sm:$0xff] %vm244, %v390
    %407 = vst.msk [vmem:[%s3 + $0x78] sm:$0xff] %vm244, %v391
  $region21: #{igae_encoder.5} parent=0 // pred_fallthru
    _
  // Predicated region
  $region22: #{igae_encoder.5} parent=0 // pred_check
    _
  $region23: #{igae_encoder.5} parent=0 // pred_check_branch
    %409 = sbr.rel (0) target = $region25
  $region24: #{igae_encoder.5} parent=0 // pred_region
    _
  $region25: #{igae_encoder.5} parent=0 // pred_fallthru
    _
  // Predicated region
  $region26: #{igae_encoder.5} parent=0 // pred_check
    _
  $region27: #{igae_encoder.5} parent=0 // pred_check_branch
    %411 = sbr.rel (0) target = $region29
  $region28: #{igae_encoder.5} parent=0 // pred_region
    _
  $region29: #{igae_encoder.5} parent=0 // pred_fallthru
    _

// kernel: igae_encoder.3
$region0: #{igae_encoder.3}
  #allocation0 [shape = 'u32[]', space=smem, size = 0x4, offset = 0x4, fixed_abs, tag = 'smem constant byte address 0x4 - core index']
  #allocation1 [shape = 'u32[144,128]{1,0:T(1,128)}', space=vmem, size = 0x12000, scoped, tag = 'internal scratch']
  #allocation2 [shape = 'f32[128,32]{1,0:T(8,128)}', space=vmem, size = 0x10000, scoped, tag = 'scratch operand']
  %s0 = inlined_call_operand.vmem [shape: f32[128,128], index: 0, kind: input, shape index: {}]
  %s1 = inlined_call_operand.vmem [shape: f32[128,32], index: 1, kind: input, shape index: {}]
  %s2 = inlined_call_operand.vmem [shape: f32[128,1], index: 2, kind: input, shape index: {}]
  %s3 = inlined_call_operand.vmem [shape: f32[32,16], index: 3, kind: input, shape index: {}]
  %s4 = inlined_call_operand.vmem [shape: f32[128,16], index: 4, kind: output, shape index: {}]
  %s5 = sld [smem:[#allocation0]]
  $region34: #{igae_encoder.3} parent=0
    _
  %s7 = ssub.s32 1, %s5
  %s8 = scalar_select 0, %s7, %s5
  // Predicated region
  $region2: #{igae_encoder.3} parent=0 // pred_check
    _
  $region3: #{igae_encoder.3} parent=0 // pred_check_branch
    %10 = sbr.rel (0) target = $region5
  $region4: #{igae_encoder.3} parent=0 // pred_region
    _
  $region5: #{igae_encoder.3} parent=0 // pred_fallthru
    _
  // Predicated region
  $region6: #{igae_encoder.3} parent=0 // pred_check
    _
  $region7: #{igae_encoder.3} parent=0 // pred_check_branch
    %12 = sbr.rel (0) target = $region9
  $region8: #{igae_encoder.3} parent=0 // pred_region
    _
  $region9: #{igae_encoder.3} parent=0 // pred_fallthru
    _
  // Predicated region
  $region10: #{igae_encoder.3} parent=0 // pred_check
    _
  $region11: #{igae_encoder.3} parent=0 // pred_check_branch
    %14 = sbr.rel (0) target = $region13
  $region12: #{igae_encoder.3} parent=0 // pred_region
    _
  $region13: #{igae_encoder.3} parent=0 // pred_fallthru
    _
  // Predicated region
  $region14: #{igae_encoder.3} parent=0 // pred_check
    _
  $region15: #{igae_encoder.3} parent=0 // pred_check_branch
    %16 = sbr.rel (0) target = $region17
  $region16: #{igae_encoder.3} parent=0 // pred_region
    _
  $region17: #{igae_encoder.3} parent=0 // pred_fallthru
    _
  %p17 = scmp.eq.s32.totalorder 0, 0
  // Predicated region
  $region18: #{igae_encoder.3} parent=0 // pred_check
    %p18 = pneg %p17
  $region19: #{igae_encoder.3} parent=0 // pred_check_branch
    %20 = sbr.rel (%p18) target = $region21
  $region20: #{igae_encoder.3} parent=0 // pred_region
    %vm21 = vcmask 261120
    %22 = vst.msk [vmem:[#allocation2] sm:$0xff] %vm21, 0.0
    %23 = vst.msk [vmem:[#allocation2 + $0x8] sm:$0xff] %vm21, 0.0
    %24 = vst.msk [vmem:[#allocation2 + $0x10] sm:$0xff] %vm21, 0.0
    %25 = vst.msk [vmem:[#allocation2 + $0x18] sm:$0xff] %vm21, 0.0
    %26 = vst.msk [vmem:[#allocation2 + $0x20] sm:$0xff] %vm21, 0.0
    %27 = vst.msk [vmem:[#allocation2 + $0x28] sm:$0xff] %vm21, 0.0
    %28 = vst.msk [vmem:[#allocation2 + $0x30] sm:$0xff] %vm21, 0.0
    %29 = vst.msk [vmem:[#allocation2 + $0x38] sm:$0xff] %vm21, 0.0
    %30 = vst.msk [vmem:[#allocation2 + $0x40] sm:$0xff] %vm21, 0.0
    %31 = vst.msk [vmem:[#allocation2 + $0x48] sm:$0xff] %vm21, 0.0
    %32 = vst.msk [vmem:[#allocation2 + $0x50] sm:$0xff] %vm21, 0.0
    %33 = vst.msk [vmem:[#allocation2 + $0x58] sm:$0xff] %vm21, 0.0
    %34 = vst.msk [vmem:[#allocation2 + $0x60] sm:$0xff] %vm21, 0.0
    %35 = vst.msk [vmem:[#allocation2 + $0x68] sm:$0xff] %vm21, 0.0
    %36 = vst.msk [vmem:[#allocation2 + $0x70] sm:$0xff] %vm21, 0.0
    %37 = vst.msk [vmem:[#allocation2 + $0x78] sm:$0xff] %vm21, 0.0
  $region21: #{igae_encoder.3} parent=0 // pred_fallthru
    _
  %v38 = vld [vmem:[%s0] sm:$0xff]
  %v39 = vld [vmem:[%s0 + $0x8] sm:$0xff]
  %v40 = vld [vmem:[%s0 + $0x10] sm:$0xff]
  %v41 = vld [vmem:[%s0 + $0x18] sm:$0xff]
  %v42 = vld [vmem:[%s0 + $0x20] sm:$0xff]
  %v43 = vld [vmem:[%s0 + $0x28] sm:$0xff]
  %v44 = vld [vmem:[%s0 + $0x30] sm:$0xff]
  %v45 = vld [vmem:[%s0 + $0x38] sm:$0xff]
  %v46 = vld [vmem:[%s0 + $0x40] sm:$0xff]
  %v47 = vld [vmem:[%s0 + $0x48] sm:$0xff]
  %v48 = vld [vmem:[%s0 + $0x50] sm:$0xff]
  %v49 = vld [vmem:[%s0 + $0x58] sm:$0xff]
  %v50 = vld [vmem:[%s0 + $0x60] sm:$0xff]
  %v51 = vld [vmem:[%s0 + $0x68] sm:$0xff]
  %v52 = vld [vmem:[%s0 + $0x70] sm:$0xff]
  %v53 = vld [vmem:[%s0 + $0x78] sm:$0xff]
  %v54 = vld [vmem:[#allocation2] sm:$0xff]
  %v55 = vld [vmem:[#allocation2 + $0x8] sm:$0xff]
  %v56 = vld [vmem:[#allocation2 + $0x10] sm:$0xff]
  %v57 = vld [vmem:[#allocation2 + $0x18] sm:$0xff]
  %v58 = vld [vmem:[#allocation2 + $0x20] sm:$0xff]
  %v59 = vld [vmem:[#allocation2 + $0x28] sm:$0xff]
  %v60 = vld [vmem:[#allocation2 + $0x30] sm:$0xff]
  %v61 = vld [vmem:[#allocation2 + $0x38] sm:$0xff]
  %v62 = vld [vmem:[#allocation2 + $0x40] sm:$0xff]
  %v63 = vld [vmem:[#allocation2 + $0x48] sm:$0xff]
  %v64 = vld [vmem:[#allocation2 + $0x50] sm:$0xff]
  %v65 = vld [vmem:[#allocation2 + $0x58] sm:$0xff]
  %v66 = vld [vmem:[#allocation2 + $0x60] sm:$0xff]
  %v67 = vld [vmem:[#allocation2 + $0x68] sm:$0xff]
  %v68 = vld [vmem:[#allocation2 + $0x70] sm:$0xff]
  %v69 = vld [vmem:[#allocation2 + $0x78] sm:$0xff]
  %v70 = vld [vmem:[%s1] sm:$0xff]
  %v71 = vld [vmem:[%s1 + $0x8] sm:$0xff]
  %v72 = vld [vmem:[%s1 + $0x10] sm:$0xff]
  %v73 = vld [vmem:[%s1 + $0x18] sm:$0xff]
  %v74 = vld [vmem:[%s1 + $0x20] sm:$0xff]
  %v75 = vld [vmem:[%s1 + $0x28] sm:$0xff]
  %v76 = vld [vmem:[%s1 + $0x30] sm:$0xff]
  %v77 = vld [vmem:[%s1 + $0x38] sm:$0xff]
  %v78 = vld [vmem:[%s1 + $0x40] sm:$0xff]
  %v79 = vld [vmem:[%s1 + $0x48] sm:$0xff]
  %v80 = vld [vmem:[%s1 + $0x50] sm:$0xff]
  %v81 = vld [vmem:[%s1 + $0x58] sm:$0xff]
  %v82 = vld [vmem:[%s1 + $0x60] sm:$0xff]
  %v83 = vld [vmem:[%s1 + $0x68] sm:$0xff]
  %v84 = vld [vmem:[%s1 + $0x70] sm:$0xff]
  %v85 = vld [vmem:[%s1 + $0x78] sm:$0xff]
  %86 = vmatprep.subr.mxu0 0.0
  %87 = vmatpush1.msra.mxu0 %v70
  %88 = vmatprep.subr.mxu0 0.0
  %89 = vmatpush1.msra.mxu0 %v71
  %90 = vmatprep.subr.mxu0 0.0
  %91 = vmatpush1.msra.mxu0 %v72
  %92 = vmatprep.subr.mxu0 0.0
  %93 = vmatpush1.msra.mxu0 %v73
  %94 = vmatprep.subr.mxu0 0.0
  %95 = vmatpush1.msra.mxu0 %v74
  %96 = vmatprep.subr.mxu0 0.0
  %97 = vmatpush1.msra.mxu0 %v75
  %98 = vmatprep.subr.mxu0 0.0
  %99 = vmatpush1.msra.mxu0 %v76
  %100 = vmatprep.subr.mxu0 0.0
  %101 = vmatpush1.msra.mxu0 %v77
  %102 = vmatprep.subr.mxu0 0.0
  %103 = vmatpush1.msra.mxu0 %v78
  %104 = vmatprep.subr.mxu0 0.0
  %105 = vmatpush1.msra.mxu0 %v79
  %106 = vmatprep.subr.mxu0 0.0
  %107 = vmatpush1.msra.mxu0 %v80
  %108 = vmatprep.subr.mxu0 0.0
  %109 = vmatpush1.msra.mxu0 %v81
  %110 = vmatprep.subr.mxu0 0.0
  %111 = vmatpush1.msra.mxu0 %v82
  %112 = vmatprep.subr.mxu0 0.0
  %113 = vmatpush1.msra.mxu0 %v83
  %114 = vmatprep.subr.mxu0 0.0
  %115 = vmatpush1.msra.mxu0 %v84
  %116 = vmatprep.subr.mxu0 0.0
  %117 = vmatpush1.msra.mxu0 %v85
  %118 = vmatprep.subr.mxu0 0.0
  %119 = vmatpush1.msra.mxu0 0.0
  %120 = vmatprep.subr.mxu0 0.0
  %121 = vmatpush1.msra.mxu0 0.0
  %122 = vmatprep.subr.mxu0 0.0
  %123 = vmatpush1.msra.mxu0 0.0
  %124 = vmatprep.subr.mxu0 0.0
  %125 = vmatpush1.msra.mxu0 0.0
  %126 = vmatprep.subr.mxu0 0.0
  %127 = vmatpush1.msra.mxu0 0.0
  %128 = vmatprep.subr.mxu0 0.0
  %129 = vmatpush1.msra.mxu0 0.0
  %130 = vmatprep.subr.mxu0 0.0
  %131 = vmatpush1.msra.mxu0 0.0
  %132 = vmatprep.subr.mxu0 0.0
  %133 = vmatpush1.msra.mxu0 0.0
  %134 = vmatprep.subr.mxu0 0.0
  %135 = vmatpush1.msra.mxu0 0.0
  %136 = vmatprep.subr.mxu0 0.0
  %137 = vmatpush1.msra.mxu0 0.0
  %138 = vmatprep.subr.mxu0 0.0
  %139 = vmatpush1.msra.mxu0 0.0
  %140 = vmatprep.subr.mxu0 0.0
  %141 = vmatpush1.msra.mxu0 0.0
  %142 = vmatprep.subr.mxu0 0.0
  %143 = vmatpush1.msra.mxu0 0.0
  %144 = vmatprep.subr.mxu0 0.0
  %145 = vmatpush1.msra.mxu0 0.0
  %146 = vmatprep.subr.mxu0 0.0
  %147 = vmatpush1.msra.mxu0 0.0
  %148 = vmatprep.subr.mxu0 0.0
  %149 = vmatpush1.msra.mxu0 0.0
  %150 = vmatprep.mubr.f32.mxu0 0.0
  %151 = vmatmul.mubr.f32.gmra.mrb[0].mxu0 %v38
  %v152 = vpop.f32.mrb[0].mxu0
  %v153 = vadd.f32 0.0, %v152
  %v154 = vpop.f32.mrb[0].mxu0
  %155 = vmatprep.mubr.f32.mxu0 0.0
  %156 = vmatmul.mubr.f32.gmra.mrb[0].mxu0 %v39
  %v157 = vpop.f32.mrb[0].mxu0
  %v158 = vadd.f32 0.0, %v157
  %v159 = vpop.f32.mrb[0].mxu0
  %160 = vmatprep.mubr.f32.mxu0 0.0
  %161 = vmatmul.mubr.f32.gmra.mrb[0].mxu0 %v40
  %v162 = vpop.f32.mrb[0].mxu0
  %v163 = vadd.f32 0.0, %v162
  %v164 = vpop.f32.mrb[0].mxu0
  %165 = vmatprep.mubr.f32.mxu0 0.0
  %166 = vmatmul.mubr.f32.gmra.mrb[0].mxu0 %v41
  %v167 = vpop.f32.mrb[0].mxu0
  %v168 = vadd.f32 0.0, %v167
  %v169 = vpop.f32.mrb[0].mxu0
  %170 = vmatprep.mubr.f32.mxu0 0.0
  %171 = vmatmul.mubr.f32.gmra.mrb[0].mxu0 %v42
  %v172 = vpop.f32.mrb[0].mxu0
  %v173 = vadd.f32 0.0, %v172
  %v174 = vpop.f32.mrb[0].mxu0
  %175 = vmatprep.mubr.f32.mxu0 0.0
  %176 = vmatmul.mubr.f32.gmra.mrb[0].mxu0 %v43
  %v177 = vpop.f32.mrb[0].mxu0
  %v178 = vadd.f32 0.0, %v177
  %v179 = vpop.f32.mrb[0].mxu0
  %180 = vmatprep.mubr.f32.mxu0 0.0
  %181 = vmatmul.mubr.f32.gmra.mrb[0].mxu0 %v44
  %v182 = vpop.f32.mrb[0].mxu0
  %v183 = vadd.f32 0.0, %v182
  %v184 = vpop.f32.mrb[0].mxu0
  %185 = vmatprep.mubr.f32.mxu0 0.0
  %186 = vmatmul.mubr.f32.gmra.mrb[0].mxu0 %v45
  %v187 = vpop.f32.mrb[0].mxu0
  %v188 = vadd.f32 0.0, %v187
  %v189 = vpop.f32.mrb[0].mxu0
  %190 = vmatprep.mubr.f32.mxu0 0.0
  %191 = vmatmul.mubr.f32.gmra.mrb[0].mxu0 %v46
  %v192 = vpop.f32.mrb[0].mxu0
  %v193 = vadd.f32 0.0, %v192
  %v194 = vpop.f32.mrb[0].mxu0
  %195 = vmatprep.mubr.f32.mxu0 0.0
  %196 = vmatmul.mubr.f32.gmra.mrb[0].mxu0 %v47
  %v197 = vpop.f32.mrb[0].mxu0
  %v198 = vadd.f32 0.0, %v197
  %v199 = vpop.f32.mrb[0].mxu0
  %200 = vmatprep.mubr.f32.mxu0 0.0
  %201 = vmatmul.mubr.f32.gmra.mrb[0].mxu0 %v48
  %v202 = vpop.f32.mrb[0].mxu0
  %v203 = vadd.f32 0.0, %v202
  %v204 = vpop.f32.mrb[0].mxu0
  %205 = vmatprep.mubr.f32.mxu0 0.0
  %206 = vmatmul.mubr.f32.gmra.mrb[0].mxu0 %v49
  %v207 = vpop.f32.mrb[0].mxu0
  %v208 = vadd.f32 0.0, %v207
  %v209 = vpop.f32.mrb[0].mxu0
  %210 = vmatprep.mubr.f32.mxu0 0.0
  %211 = vmatmul.mubr.f32.gmra.mrb[0].mxu0 %v50
  %v212 = vpop.f32.mrb[0].mxu0
  %v213 = vadd.f32 0.0, %v212
  %v214 = vpop.f32.mrb[0].mxu0
  %215 = vmatprep.mubr.f32.mxu0 0.0
  %216 = vmatmul.mubr.f32.gmra.mrb[0].mxu0 %v51
  %v217 = vpop.f32.mrb[0].mxu0
  %v218 = vadd.f32 0.0, %v217
  %v219 = vpop.f32.mrb[0].mxu0
  %220 = vmatprep.mubr.f32.mxu0 0.0
  %221 = vmatmul.mubr.f32.gmra.mrb[0].mxu0 %v52
  %v222 = vpop.f32.mrb[0].mxu0
  %v223 = vadd.f32 0.0, %v222
  %v224 = vpop.f32.mrb[0].mxu0
  %225 = vmatprep.mubr.f32.mxu0 0.0
  %226 = vmatmul.mubr.f32.gmra.mrb[0].mxu0 %v53
  %v227 = vpop.f32.mrb[0].mxu0
  %v228 = vadd.f32 0.0, %v227
  %v229 = vpop.f32.mrb[0].mxu0
  %230 = vdwg.mxu0
  %v231 = vadd.f32 %v54, %v153
  %v232 = vadd.f32 %v55, %v158
  %v233 = vadd.f32 %v56, %v163
  %v234 = vadd.f32 %v57, %v168
  %v235 = vadd.f32 %v58, %v173
  %v236 = vadd.f32 %v59, %v178
  %v237 = vadd.f32 %v60, %v183
  %v238 = vadd.f32 %v61, %v188
  %v239 = vadd.f32 %v62, %v193
  %v240 = vadd.f32 %v63, %v198
  %v241 = vadd.f32 %v64, %v203
  %v242 = vadd.f32 %v65, %v208
  %v243 = vadd.f32 %v66, %v213
  %v244 = vadd.f32 %v67, %v218
  %v245 = vadd.f32 %v68, %v223
  %v246 = vadd.f32 %v69, %v228
  %vm247 = vcmask 261120
  %248 = vst.msk [vmem:[#allocation2] sm:$0xff] %vm247, %v231
  %249 = vst.msk [vmem:[#allocation2 + $0x8] sm:$0xff] %vm247, %v232
  %250 = vst.msk [vmem:[#allocation2 + $0x10] sm:$0xff] %vm247, %v233
  %251 = vst.msk [vmem:[#allocation2 + $0x18] sm:$0xff] %vm247, %v234
  %252 = vst.msk [vmem:[#allocation2 + $0x20] sm:$0xff] %vm247, %v235
  %253 = vst.msk [vmem:[#allocation2 + $0x28] sm:$0xff] %vm247, %v236
  %254 = vst.msk [vmem:[#allocation2 + $0x30] sm:$0xff] %vm247, %v237
  %255 = vst.msk [vmem:[#allocation2 + $0x38] sm:$0xff] %vm247, %v238
  %256 = vst.msk [vmem:[#allocation2 + $0x40] sm:$0xff] %vm247, %v239
  %257 = vst.msk [vmem:[#allocation2 + $0x48] sm:$0xff] %vm247, %v240
  %258 = vst.msk [vmem:[#allocation2 + $0x50] sm:$0xff] %vm247, %v241
  %259 = vst.msk [vmem:[#allocation2 + $0x58] sm:$0xff] %vm247, %v242
  %260 = vst.msk [vmem:[#allocation2 + $0x60] sm:$0xff] %vm247, %v243
  %261 = vst.msk [vmem:[#allocation2 + $0x68] sm:$0xff] %vm247, %v244
  %262 = vst.msk [vmem:[#allocation2 + $0x70] sm:$0xff] %vm247, %v245
  %263 = vst.msk [vmem:[#allocation2 + $0x78] sm:$0xff] %vm247, %v246
  // Predicated region
  $region22: #{igae_encoder.3} parent=0 // pred_check
    %p264 = pneg %p17
  $region23: #{igae_encoder.3} parent=0 // pred_check_branch
    %266 = sbr.rel (%p264) target = $region25
  $region24: #{igae_encoder.3} parent=0 // pred_region
    %v267 = vld [vmem:[#allocation2] sm:$0xff]
    %v268 = vld [vmem:[#allocation2 + $0x8] sm:$0xff]
    %v269 = vld [vmem:[#allocation2 + $0x10] sm:$0xff]
    %v270 = vld [vmem:[#allocation2 + $0x18] sm:$0xff]
    %v271 = vld [vmem:[#allocation2 + $0x20] sm:$0xff]
    %v272 = vld [vmem:[#allocation2 + $0x28] sm:$0xff]
    %v273 = vld [vmem:[#allocation2 + $0x30] sm:$0xff]
    %v274 = vld [vmem:[#allocation2 + $0x38] sm:$0xff]
    %v275 = vld [vmem:[#allocation2 + $0x40] sm:$0xff]
    %v276 = vld [vmem:[#allocation2 + $0x48] sm:$0xff]
    %v277 = vld [vmem:[#allocation2 + $0x50] sm:$0xff]
    %v278 = vld [vmem:[#allocation2 + $0x58] sm:$0xff]
    %v279 = vld [vmem:[#allocation2 + $0x60] sm:$0xff]
    %v280 = vld [vmem:[#allocation2 + $0x68] sm:$0xff]
    %v281 = vld [vmem:[#allocation2 + $0x70] sm:$0xff]
    %v282 = vld [vmem:[#allocation2 + $0x78] sm:$0xff]
    %v283 = vld [vmem:[%s2] sm:$0xff]
    %v284 = vld [vmem:[%s2 + $0x8] sm:$0xff]
    %v285 = vld [vmem:[%s2 + $0x10] sm:$0xff]
    %v286 = vld [vmem:[%s2 + $0x18] sm:$0xff]
    %v287 = vld [vmem:[%s2 + $0x20] sm:$0xff]
    %v288 = vld [vmem:[%s2 + $0x28] sm:$0xff]
    %v289 = vld [vmem:[%s2 + $0x30] sm:$0xff]
    %v290 = vld [vmem:[%s2 + $0x38] sm:$0xff]
    %v291 = vld [vmem:[%s2 + $0x40] sm:$0xff]
    %v292 = vld [vmem:[%s2 + $0x48] sm:$0xff]
    %v293 = vld [vmem:[%s2 + $0x50] sm:$0xff]
    %v294 = vld [vmem:[%s2 + $0x58] sm:$0xff]
    %v295 = vld [vmem:[%s2 + $0x60] sm:$0xff]
    %v296 = vld [vmem:[%s2 + $0x68] sm:$0xff]
    %v297 = vld [vmem:[%s2 + $0x70] sm:$0xff]
    %v298 = vld [vmem:[%s2 + $0x78] sm:$0xff]
    %300 = vset.pattern.permute.xlu0 0
    %301 = vperm.xlu0 %300, %v283
    %v302 = vpop.permute.xlu0 %301
    %305 = vset.pattern.permute.xlu0 0
    %306 = vperm.xlu0 %305, %v284
    %v307 = vpop.permute.xlu0 %306
    %310 = vset.pattern.permute.xlu0 0
    %311 = vperm.xlu0 %310, %v285
    %v312 = vpop.permute.xlu0 %311
    %315 = vset.pattern.permute.xlu0 0
    %316 = vperm.xlu0 %315, %v286
    %v317 = vpop.permute.xlu0 %316
    %320 = vset.pattern.permute.xlu0 0
    %321 = vperm.xlu0 %320, %v287
    %v322 = vpop.permute.xlu0 %321
    %325 = vset.pattern.permute.xlu0 0
    %326 = vperm.xlu0 %325, %v288
    %v327 = vpop.permute.xlu0 %326
    %330 = vset.pattern.permute.xlu0 0
    %331 = vperm.xlu0 %330, %v289
    %v332 = vpop.permute.xlu0 %331
    %335 = vset.pattern.permute.xlu0 0
    %336 = vperm.xlu0 %335, %v290
    %v337 = vpop.permute.xlu0 %336
    %340 = vset.pattern.permute.xlu0 0
    %341 = vperm.xlu0 %340, %v291
    %v342 = vpop.permute.xlu0 %341
    %345 = vset.pattern.permute.xlu0 0
    %346 = vperm.xlu0 %345, %v292
    %v347 = vpop.permute.xlu0 %346
    %350 = vset.pattern.permute.xlu0 0
    %351 = vperm.xlu0 %350, %v293
    %v352 = vpop.permute.xlu0 %351
    %355 = vset.pattern.permute.xlu0 0
    %356 = vperm.xlu0 %355, %v294
    %v357 = vpop.permute.xlu0 %356
    %360 = vset.pattern.permute.xlu0 0
    %361 = vperm.xlu0 %360, %v295
    %v362 = vpop.permute.xlu0 %361
    %365 = vset.pattern.permute.xlu0 0
    %366 = vperm.xlu0 %365, %v296
    %v367 = vpop.permute.xlu0 %366
    %370 = vset.pattern.permute.xlu0 0
    %371 = vperm.xlu0 %370, %v297
    %v372 = vpop.permute.xlu0 %371
    %375 = vset.pattern.permute.xlu0 0
    %376 = vperm.xlu0 %375, %v298
    %v377 = vpop.permute.xlu0 %376
    %v379 = vmul.f32 %v267, %v302
    %v380 = vmul.f32 %v268, %v307
    %v381 = vmul.f32 %v269, %v312
    %v382 = vmul.f32 %v270, %v317
    %v383 = vmul.f32 %v271, %v322
    %v384 = vmul.f32 %v272, %v327
    %v385 = vmul.f32 %v273, %v332
    %v386 = vmul.f32 %v274, %v337
    %v387 = vmul.f32 %v275, %v342
    %v388 = vmul.f32 %v276, %v347
    %v389 = vmul.f32 %v277, %v352
    %v390 = vmul.f32 %v278, %v357
    %v391 = vmul.f32 %v279, %v362
    %v392 = vmul.f32 %v280, %v367
    %v393 = vmul.f32 %v281, %v372
    %v394 = vmul.f32 %v282, %v377
    %v395 = vld [vmem:[%s3] sm:$0xff]
    %v396 = vld [vmem:[%s3 + $0x8] sm:$0xff]
    %v397 = vld [vmem:[%s3 + $0x10] sm:$0xff]
    %v398 = vld [vmem:[%s3 + $0x18] sm:$0xff]
    %v400 = vsel %vm247, %v379, 0
    %v403 = vsel %vm247, %v380, 0
    %v406 = vsel %vm247, %v381, 0
    %v409 = vsel %vm247, %v382, 0
    %v412 = vsel %vm247, %v383, 0
    %v415 = vsel %vm247, %v384, 0
    %v418 = vsel %vm247, %v385, 0
    %v421 = vsel %vm247, %v386, 0
    %v424 = vsel %vm247, %v387, 0
    %v427 = vsel %vm247, %v388, 0
    %v430 = vsel %vm247, %v389, 0
    %v433 = vsel %vm247, %v390, 0
    %v436 = vsel %vm247, %v391, 0
    %v439 = vsel %vm247, %v392, 0
    %v442 = vsel %vm247, %v393, 0
    %v445 = vsel %vm247, %v394, 0
    %447 = vmatprep.subr.mxu0 0.0
    %448 = vmatpush1.msra.mxu0 %v395
    %449 = vmatprep.subr.mxu0 0.0
    %450 = vmatpush1.msra.mxu0 %v396
    %451 = vmatprep.subr.mxu0 0.0
    %452 = vmatpush1.msra.mxu0 %v397
    %453 = vmatprep.subr.mxu0 0.0
    %454 = vmatpush1.msra.mxu0 %v398
    %455 = vmatprep.subr.mxu0 0.0
    %456 = vmatpush1.msra.mxu0 0.0
    %457 = vmatprep.subr.mxu0 0.0
    %458 = vmatpush1.msra.mxu0 0.0
    %459 = vmatprep.subr.mxu0 0.0
    %460 = vmatpush1.msra.mxu0 0.0
    %461 = vmatprep.subr.mxu0 0.0
    %462 = vmatpush1.msra.mxu0 0.0
    %463 = vmatprep.subr.mxu0 0.0
    %464 = vmatpush1.msra.mxu0 0.0
    %465 = vmatprep.subr.mxu0 0.0
    %466 = vmatpush1.msra.mxu0 0.0
    %467 = vmatprep.subr.mxu0 0.0
    %468 = vmatpush1.msra.mxu0 0.0
    %469 = vmatprep.subr.mxu0 0.0
    %470 = vmatpush1.msra.mxu0 0.0
    %471 = vmatprep.subr.mxu0 0.0
    %472 = vmatpush1.msra.mxu0 0.0
    %473 = vmatprep.subr.mxu0 0.0
    %474 = vmatpush1.msra.mxu0 0.0
    %475 = vmatprep.subr.mxu0 0.0
    %476 = vmatpush1.msra.mxu0 0.0
    %477 = vmatprep.subr.mxu0 0.0
    %478 = vmatpush1.msra.mxu0 0.0
    %479 = vmatprep.subr.mxu0 0.0
    %480 = vmatpush1.msra.mxu0 0.0
    %481 = vmatprep.subr.mxu0 0.0
    %482 = vmatpush1.msra.mxu0 0.0
    %483 = vmatprep.subr.mxu0 0.0
    %484 = vmatpush1.msra.mxu0 0.0
    %485 = vmatprep.subr.mxu0 0.0
    %486 = vmatpush1.msra.mxu0 0.0
    %487 = vmatprep.subr.mxu0 0.0
    %488 = vmatpush1.msra.mxu0 0.0
    %489 = vmatprep.subr.mxu0 0.0
    %490 = vmatpush1.msra.mxu0 0.0
    %491 = vmatprep.subr.mxu0 0.0
    %492 = vmatpush1.msra.mxu0 0.0
    %493 = vmatprep.subr.mxu0 0.0
    %494 = vmatpush1.msra.mxu0 0.0
    %495 = vmatprep.subr.mxu0 0.0
    %496 = vmatpush1.msra.mxu0 0.0
    %497 = vmatprep.subr.mxu0 0.0
    %498 = vmatpush1.msra.mxu0 0.0
    %499 = vmatprep.subr.mxu0 0.0
    %500 = vmatpush1.msra.mxu0 0.0
    %501 = vmatprep.subr.mxu0 0.0
    %502 = vmatpush1.msra.mxu0 0.0
    %503 = vmatprep.subr.mxu0 0.0
    %504 = vmatpush1.msra.mxu0 0.0
    %505 = vmatprep.subr.mxu0 0.0
    %506 = vmatpush1.msra.mxu0 0.0
    %507 = vmatprep.subr.mxu0 0.0
    %508 = vmatpush1.msra.mxu0 0.0
    %509 = vmatprep.subr.mxu0 0.0
    %510 = vmatpush1.msra.mxu0 0.0
    %511 = vmatprep.mubr.f32.mxu0 0.0
    %512 = vmatmul.mubr.f32.gmra.mrb[0].mxu0 %v400
    %v513 = vpop.f32.mrb[0].mxu0
    %v514 = vadd.f32 0.0, %v513
    %v515 = vpop.f32.mrb[0].mxu0
    %516 = vmatprep.mubr.f32.mxu0 0.0
    %517 = vmatmul.mubr.f32.gmra.mrb[0].mxu0 %v403
    %v518 = vpop.f32.mrb[0].mxu0
    %v519 = vadd.f32 0.0, %v518
    %v520 = vpop.f32.mrb[0].mxu0
    %521 = vmatprep.mubr.f32.mxu0 0.0
    %522 = vmatmul.mubr.f32.gmra.mrb[0].mxu0 %v406
    %v523 = vpop.f32.mrb[0].mxu0
    %v524 = vadd.f32 0.0, %v523
    %v525 = vpop.f32.mrb[0].mxu0
    %526 = vmatprep.mubr.f32.mxu0 0.0
    %527 = vmatmul.mubr.f32.gmra.mrb[0].mxu0 %v409
    %v528 = vpop.f32.mrb[0].mxu0
    %v529 = vadd.f32 0.0, %v528
    %v530 = vpop.f32.mrb[0].mxu0
    %531 = vmatprep.mubr.f32.mxu0 0.0
    %532 = vmatmul.mubr.f32.gmra.mrb[0].mxu0 %v412
    %v533 = vpop.f32.mrb[0].mxu0
    %v534 = vadd.f32 0.0, %v533
    %v535 = vpop.f32.mrb[0].mxu0
    %536 = vmatprep.mubr.f32.mxu0 0.0
    %537 = vmatmul.mubr.f32.gmra.mrb[0].mxu0 %v415
    %v538 = vpop.f32.mrb[0].mxu0
    %v539 = vadd.f32 0.0, %v538
    %v540 = vpop.f32.mrb[0].mxu0
    %541 = vmatprep.mubr.f32.mxu0 0.0
    %542 = vmatmul.mubr.f32.gmra.mrb[0].mxu0 %v418
    %v543 = vpop.f32.mrb[0].mxu0
    %v544 = vadd.f32 0.0, %v543
    %v545 = vpop.f32.mrb[0].mxu0
    %546 = vmatprep.mubr.f32.mxu0 0.0
    %547 = vmatmul.mubr.f32.gmra.mrb[0].mxu0 %v421
    %v548 = vpop.f32.mrb[0].mxu0
    %v549 = vadd.f32 0.0, %v548
    %v550 = vpop.f32.mrb[0].mxu0
    %551 = vmatprep.mubr.f32.mxu0 0.0
    %552 = vmatmul.mubr.f32.gmra.mrb[0].mxu0 %v424
    %v553 = vpop.f32.mrb[0].mxu0
    %v554 = vadd.f32 0.0, %v553
    %v555 = vpop.f32.mrb[0].mxu0
    %556 = vmatprep.mubr.f32.mxu0 0.0
    %557 = vmatmul.mubr.f32.gmra.mrb[0].mxu0 %v427
    %v558 = vpop.f32.mrb[0].mxu0
    %v559 = vadd.f32 0.0, %v558
    %v560 = vpop.f32.mrb[0].mxu0
    %561 = vmatprep.mubr.f32.mxu0 0.0
    %562 = vmatmul.mubr.f32.gmra.mrb[0].mxu0 %v430
    %v563 = vpop.f32.mrb[0].mxu0
    %v564 = vadd.f32 0.0, %v563
    %v565 = vpop.f32.mrb[0].mxu0
    %566 = vmatprep.mubr.f32.mxu0 0.0
    %567 = vmatmul.mubr.f32.gmra.mrb[0].mxu0 %v433
    %v568 = vpop.f32.mrb[0].mxu0
    %v569 = vadd.f32 0.0, %v568
    %v570 = vpop.f32.mrb[0].mxu0
    %571 = vmatprep.mubr.f32.mxu0 0.0
    %572 = vmatmul.mubr.f32.gmra.mrb[0].mxu0 %v436
    %v573 = vpop.f32.mrb[0].mxu0
    %v574 = vadd.f32 0.0, %v573
    %v575 = vpop.f32.mrb[0].mxu0
    %576 = vmatprep.mubr.f32.mxu0 0.0
    %577 = vmatmul.mubr.f32.gmra.mrb[0].mxu0 %v439
    %v578 = vpop.f32.mrb[0].mxu0
    %v579 = vadd.f32 0.0, %v578
    %v580 = vpop.f32.mrb[0].mxu0
    %581 = vmatprep.mubr.f32.mxu0 0.0
    %582 = vmatmul.mubr.f32.gmra.mrb[0].mxu0 %v442
    %v583 = vpop.f32.mrb[0].mxu0
    %v584 = vadd.f32 0.0, %v583
    %v585 = vpop.f32.mrb[0].mxu0
    %586 = vmatprep.mubr.f32.mxu0 0.0
    %587 = vmatmul.mubr.f32.gmra.mrb[0].mxu0 %v445
    %v588 = vpop.f32.mrb[0].mxu0
    %v589 = vadd.f32 0.0, %v588
    %v590 = vpop.f32.mrb[0].mxu0
    %591 = vdwg.mxu0
    %v592 = vtanh.pop %v514
    %v593 = vtanh.pop %v519
    %v594 = vtanh.pop %v524
    %v595 = vtanh.pop %v529
    %v596 = vtanh.pop %v534
    %v597 = vtanh.pop %v539
    %v598 = vtanh.pop %v544
    %v599 = vtanh.pop %v549
    %v600 = vtanh.pop %v554
    %v601 = vtanh.pop %v559
    %v602 = vtanh.pop %v564
    %v603 = vtanh.pop %v569
    %v604 = vtanh.pop %v574
    %v605 = vtanh.pop %v579
    %v606 = vtanh.pop %v584
    %v607 = vtanh.pop %v589
    %vm608 = vcmask 130048
    %609 = vst.msk [vmem:[%s4] sm:$0xff] %vm608, %v592
    %610 = vst.msk [vmem:[%s4 + $0x8] sm:$0xff] %vm608, %v593
    %611 = vst.msk [vmem:[%s4 + $0x10] sm:$0xff] %vm608, %v594
    %612 = vst.msk [vmem:[%s4 + $0x18] sm:$0xff] %vm608, %v595
    %613 = vst.msk [vmem:[%s4 + $0x20] sm:$0xff] %vm608, %v596
    %614 = vst.msk [vmem:[%s4 + $0x28] sm:$0xff] %vm608, %v597
    %615 = vst.msk [vmem:[%s4 + $0x30] sm:$0xff] %vm608, %v598
    %616 = vst.msk [vmem:[%s4 + $0x38] sm:$0xff] %vm608, %v599
    %617 = vst.msk [vmem:[%s4 + $0x40] sm:$0xff] %vm608, %v600
    %618 = vst.msk [vmem:[%s4 + $0x48] sm:$0xff] %vm608, %v601
    %619 = vst.msk [vmem:[%s4 + $0x50] sm:$0xff] %vm608, %v602
    %620 = vst.msk [vmem:[%s4 + $0x58] sm:$0xff] %vm608, %v603
    %621 = vst.msk [vmem:[%s4 + $0x60] sm:$0xff] %vm608, %v604
    %622 = vst.msk [vmem:[%s4 + $0x68] sm:$0xff] %vm608, %v605
    %623 = vst.msk [vmem:[%s4 + $0x70] sm:$0xff] %vm608, %v606
    %624 = vst.msk [vmem:[%s4 + $0x78] sm:$0xff] %vm608, %v607
  $region25: #{igae_encoder.3} parent=0 // pred_fallthru
    _
  // Predicated region
  $region26: #{igae_encoder.3} parent=0 // pred_check
    _
  $region27: #{igae_encoder.3} parent=0 // pred_check_branch
    %626 = sbr.rel (0) target = $region29
  $region28: #{igae_encoder.3} parent=0 // pred_region
    _
  $region29: #{igae_encoder.3} parent=0 // pred_fallthru
    _
  // Predicated region
  $region30: #{igae_encoder.3} parent=0 // pred_check
    _
  $region31: #{igae_encoder.3} parent=0 // pred_check_branch
    %628 = sbr.rel (0) target = $region33
  $region32: #{igae_encoder.3} parent=0 // pred_region
    _
  $region33: #{igae_encoder.3} parent=0 // pred_fallthru
    _

// kernel: igae_encoder.4
$region0: #{igae_encoder.4}
  #allocation0 [shape = 'u32[]', space=smem, size = 0x4, offset = 0x4, fixed_abs, tag = 'smem constant byte address 0x4 - core index']
  #allocation1 [shape = 'u32[144,128]{1,0:T(1,128)}', space=vmem, size = 0x12000, scoped, tag = 'internal scratch']
  #allocation2 [shape = 'f32[128,16]{1,0:T(8,128)}', space=vmem, size = 0x10000, scoped, tag = 'scratch operand']
  %s0 = inlined_call_operand.vmem [shape: f32[128,128], index: 0, kind: input, shape index: {}]
  %s1 = inlined_call_operand.vmem [shape: f32[128,16], index: 1, kind: input, shape index: {}]
  %s2 = inlined_call_operand.vmem [shape: f32[128,1], index: 2, kind: input, shape index: {}]
  %s3 = inlined_call_operand.vmem [shape: f32[16,8], index: 3, kind: input, shape index: {}]
  %s4 = inlined_call_operand.vmem [shape: f32[128,8], index: 4, kind: output, shape index: {}]
  %s5 = sld [smem:[#allocation0]]
  $region34: #{igae_encoder.4} parent=0
    _
  %s7 = ssub.s32 1, %s5
  %s8 = scalar_select 0, %s7, %s5
  // Predicated region
  $region2: #{igae_encoder.4} parent=0 // pred_check
    _
  $region3: #{igae_encoder.4} parent=0 // pred_check_branch
    %10 = sbr.rel (0) target = $region5
  $region4: #{igae_encoder.4} parent=0 // pred_region
    _
  $region5: #{igae_encoder.4} parent=0 // pred_fallthru
    _
  // Predicated region
  $region6: #{igae_encoder.4} parent=0 // pred_check
    _
  $region7: #{igae_encoder.4} parent=0 // pred_check_branch
    %12 = sbr.rel (0) target = $region9
  $region8: #{igae_encoder.4} parent=0 // pred_region
    _
  $region9: #{igae_encoder.4} parent=0 // pred_fallthru
    _
  // Predicated region
  $region10: #{igae_encoder.4} parent=0 // pred_check
    _
  $region11: #{igae_encoder.4} parent=0 // pred_check_branch
    %14 = sbr.rel (0) target = $region13
  $region12: #{igae_encoder.4} parent=0 // pred_region
    _
  $region13: #{igae_encoder.4} parent=0 // pred_fallthru
    _
  // Predicated region
  $region14: #{igae_encoder.4} parent=0 // pred_check
    _
  $region15: #{igae_encoder.4} parent=0 // pred_check_branch
    %16 = sbr.rel (0) target = $region17
  $region16: #{igae_encoder.4} parent=0 // pred_region
    _
  $region17: #{igae_encoder.4} parent=0 // pred_fallthru
    _
  %p17 = scmp.eq.s32.totalorder 0, 0
  // Predicated region
  $region18: #{igae_encoder.4} parent=0 // pred_check
    %p18 = pneg %p17
  $region19: #{igae_encoder.4} parent=0 // pred_check_branch
    %20 = sbr.rel (%p18) target = $region21
  $region20: #{igae_encoder.4} parent=0 // pred_region
    %vm21 = vcmask 130048
    %22 = vst.msk [vmem:[#allocation2] sm:$0xff] %vm21, 0.0
    %23 = vst.msk [vmem:[#allocation2 + $0x8] sm:$0xff] %vm21, 0.0
    %24 = vst.msk [vmem:[#allocation2 + $0x10] sm:$0xff] %vm21, 0.0
    %25 = vst.msk [vmem:[#allocation2 + $0x18] sm:$0xff] %vm21, 0.0
    %26 = vst.msk [vmem:[#allocation2 + $0x20] sm:$0xff] %vm21, 0.0
    %27 = vst.msk [vmem:[#allocation2 + $0x28] sm:$0xff] %vm21, 0.0
    %28 = vst.msk [vmem:[#allocation2 + $0x30] sm:$0xff] %vm21, 0.0
    %29 = vst.msk [vmem:[#allocation2 + $0x38] sm:$0xff] %vm21, 0.0
    %30 = vst.msk [vmem:[#allocation2 + $0x40] sm:$0xff] %vm21, 0.0
    %31 = vst.msk [vmem:[#allocation2 + $0x48] sm:$0xff] %vm21, 0.0
    %32 = vst.msk [vmem:[#allocation2 + $0x50] sm:$0xff] %vm21, 0.0
    %33 = vst.msk [vmem:[#allocation2 + $0x58] sm:$0xff] %vm21, 0.0
    %34 = vst.msk [vmem:[#allocation2 + $0x60] sm:$0xff] %vm21, 0.0
    %35 = vst.msk [vmem:[#allocation2 + $0x68] sm:$0xff] %vm21, 0.0
    %36 = vst.msk [vmem:[#allocation2 + $0x70] sm:$0xff] %vm21, 0.0
    %37 = vst.msk [vmem:[#allocation2 + $0x78] sm:$0xff] %vm21, 0.0
  $region21: #{igae_encoder.4} parent=0 // pred_fallthru
    _
  %v38 = vld [vmem:[%s0] sm:$0xff]
  %v39 = vld [vmem:[%s0 + $0x8] sm:$0xff]
  %v40 = vld [vmem:[%s0 + $0x10] sm:$0xff]
  %v41 = vld [vmem:[%s0 + $0x18] sm:$0xff]
  %v42 = vld [vmem:[%s0 + $0x20] sm:$0xff]
  %v43 = vld [vmem:[%s0 + $0x28] sm:$0xff]
  %v44 = vld [vmem:[%s0 + $0x30] sm:$0xff]
  %v45 = vld [vmem:[%s0 + $0x38] sm:$0xff]
  %v46 = vld [vmem:[%s0 + $0x40] sm:$0xff]
  %v47 = vld [vmem:[%s0 + $0x48] sm:$0xff]
  %v48 = vld [vmem:[%s0 + $0x50] sm:$0xff]
  %v49 = vld [vmem:[%s0 + $0x58] sm:$0xff]
  %v50 = vld [vmem:[%s0 + $0x60] sm:$0xff]
  %v51 = vld [vmem:[%s0 + $0x68] sm:$0xff]
  %v52 = vld [vmem:[%s0 + $0x70] sm:$0xff]
  %v53 = vld [vmem:[%s0 + $0x78] sm:$0xff]
  %v54 = vld [vmem:[#allocation2] sm:$0xff]
  %v55 = vld [vmem:[#allocation2 + $0x8] sm:$0xff]
  %v56 = vld [vmem:[#allocation2 + $0x10] sm:$0xff]
  %v57 = vld [vmem:[#allocation2 + $0x18] sm:$0xff]
  %v58 = vld [vmem:[#allocation2 + $0x20] sm:$0xff]
  %v59 = vld [vmem:[#allocation2 + $0x28] sm:$0xff]
  %v60 = vld [vmem:[#allocation2 + $0x30] sm:$0xff]
  %v61 = vld [vmem:[#allocation2 + $0x38] sm:$0xff]
  %v62 = vld [vmem:[#allocation2 + $0x40] sm:$0xff]
  %v63 = vld [vmem:[#allocation2 + $0x48] sm:$0xff]
  %v64 = vld [vmem:[#allocation2 + $0x50] sm:$0xff]
  %v65 = vld [vmem:[#allocation2 + $0x58] sm:$0xff]
  %v66 = vld [vmem:[#allocation2 + $0x60] sm:$0xff]
  %v67 = vld [vmem:[#allocation2 + $0x68] sm:$0xff]
  %v68 = vld [vmem:[#allocation2 + $0x70] sm:$0xff]
  %v69 = vld [vmem:[#allocation2 + $0x78] sm:$0xff]
  %v70 = vld [vmem:[%s1] sm:$0xff]
  %v71 = vld [vmem:[%s1 + $0x8] sm:$0xff]
  %v72 = vld [vmem:[%s1 + $0x10] sm:$0xff]
  %v73 = vld [vmem:[%s1 + $0x18] sm:$0xff]
  %v74 = vld [vmem:[%s1 + $0x20] sm:$0xff]
  %v75 = vld [vmem:[%s1 + $0x28] sm:$0xff]
  %v76 = vld [vmem:[%s1 + $0x30] sm:$0xff]
  %v77 = vld [vmem:[%s1 + $0x38] sm:$0xff]
  %v78 = vld [vmem:[%s1 + $0x40] sm:$0xff]
  %v79 = vld [vmem:[%s1 + $0x48] sm:$0xff]
  %v80 = vld [vmem:[%s1 + $0x50] sm:$0xff]
  %v81 = vld [vmem:[%s1 + $0x58] sm:$0xff]
  %v82 = vld [vmem:[%s1 + $0x60] sm:$0xff]
  %v83 = vld [vmem:[%s1 + $0x68] sm:$0xff]
  %v84 = vld [vmem:[%s1 + $0x70] sm:$0xff]
  %v85 = vld [vmem:[%s1 + $0x78] sm:$0xff]
  %86 = vmatprep.subr.mxu0 0.0
  %87 = vmatpush1.msra.mxu0 %v70
  %88 = vmatprep.subr.mxu0 0.0
  %89 = vmatpush1.msra.mxu0 %v71
  %90 = vmatprep.subr.mxu0 0.0
  %91 = vmatpush1.msra.mxu0 %v72
  %92 = vmatprep.subr.mxu0 0.0
  %93 = vmatpush1.msra.mxu0 %v73
  %94 = vmatprep.subr.mxu0 0.0
  %95 = vmatpush1.msra.mxu0 %v74
  %96 = vmatprep.subr.mxu0 0.0
  %97 = vmatpush1.msra.mxu0 %v75
  %98 = vmatprep.subr.mxu0 0.0
  %99 = vmatpush1.msra.mxu0 %v76
  %100 = vmatprep.subr.mxu0 0.0
  %101 = vmatpush1.msra.mxu0 %v77
  %102 = vmatprep.subr.mxu0 0.0
  %103 = vmatpush1.msra.mxu0 %v78
  %104 = vmatprep.subr.mxu0 0.0
  %105 = vmatpush1.msra.mxu0 %v79
  %106 = vmatprep.subr.mxu0 0.0
  %107 = vmatpush1.msra.mxu0 %v80
  %108 = vmatprep.subr.mxu0 0.0
  %109 = vmatpush1.msra.mxu0 %v81
  %110 = vmatprep.subr.mxu0 0.0
  %111 = vmatpush1.msra.mxu0 %v82
  %112 = vmatprep.subr.mxu0 0.0
  %113 = vmatpush1.msra.mxu0 %v83
  %114 = vmatprep.subr.mxu0 0.0
  %115 = vmatpush1.msra.mxu0 %v84
  %116 = vmatprep.subr.mxu0 0.0
  %117 = vmatpush1.msra.mxu0 %v85
  %118 = vmatprep.subr.mxu0 0.0
  %119 = vmatpush1.msra.mxu0 0.0
  %120 = vmatprep.subr.mxu0 0.0
  %121 = vmatpush1.msra.mxu0 0.0
  %122 = vmatprep.subr.mxu0 0.0
  %123 = vmatpush1.msra.mxu0 0.0
  %124 = vmatprep.subr.mxu0 0.0
  %125 = vmatpush1.msra.mxu0 0.0
  %126 = vmatprep.subr.mxu0 0.0
  %127 = vmatpush1.msra.mxu0 0.0
  %128 = vmatprep.subr.mxu0 0.0
  %129 = vmatpush1.msra.mxu0 0.0
  %130 = vmatprep.subr.mxu0 0.0
  %131 = vmatpush1.msra.mxu0 0.0
  %132 = vmatprep.subr.mxu0 0.0
  %133 = vmatpush1.msra.mxu0 0.0
  %134 = vmatprep.subr.mxu0 0.0
  %135 = vmatpush1.msra.mxu0 0.0
  %136 = vmatprep.subr.mxu0 0.0
  %137 = vmatpush1.msra.mxu0 0.0
  %138 = vmatprep.subr.mxu0 0.0
  %139 = vmatpush1.msra.mxu0 0.0
  %140 = vmatprep.subr.mxu0 0.0
  %141 = vmatpush1.msra.mxu0 0.0
  %142 = vmatprep.subr.mxu0 0.0
  %143 = vmatpush1.msra.mxu0 0.0
  %144 = vmatprep.subr.mxu0 0.0
  %145 = vmatpush1.msra.mxu0 0.0
  %146 = vmatprep.subr.mxu0 0.0
  %147 = vmatpush1.msra.mxu0 0.0
  %148 = vmatprep.subr.mxu0 0.0
  %149 = vmatpush1.msra.mxu0 0.0
  %150 = vmatprep.mubr.f32.mxu0 0.0
  %151 = vmatmul.mubr.f32.gmra.mrb[0].mxu0 %v38
  %v152 = vpop.f32.mrb[0].mxu0
  %v153 = vadd.f32 0.0, %v152
  %v154 = vpop.f32.mrb[0].mxu0
  %155 = vmatprep.mubr.f32.mxu0 0.0
  %156 = vmatmul.mubr.f32.gmra.mrb[0].mxu0 %v39
  %v157 = vpop.f32.mrb[0].mxu0
  %v158 = vadd.f32 0.0, %v157
  %v159 = vpop.f32.mrb[0].mxu0
  %160 = vmatprep.mubr.f32.mxu0 0.0
  %161 = vmatmul.mubr.f32.gmra.mrb[0].mxu0 %v40
  %v162 = vpop.f32.mrb[0].mxu0
  %v163 = vadd.f32 0.0, %v162
  %v164 = vpop.f32.mrb[0].mxu0
  %165 = vmatprep.mubr.f32.mxu0 0.0
  %166 = vmatmul.mubr.f32.gmra.mrb[0].mxu0 %v41
  %v167 = vpop.f32.mrb[0].mxu0
  %v168 = vadd.f32 0.0, %v167
  %v169 = vpop.f32.mrb[0].mxu0
  %170 = vmatprep.mubr.f32.mxu0 0.0
  %171 = vmatmul.mubr.f32.gmra.mrb[0].mxu0 %v42
  %v172 = vpop.f32.mrb[0].mxu0
  %v173 = vadd.f32 0.0, %v172
  %v174 = vpop.f32.mrb[0].mxu0
  %175 = vmatprep.mubr.f32.mxu0 0.0
  %176 = vmatmul.mubr.f32.gmra.mrb[0].mxu0 %v43
  %v177 = vpop.f32.mrb[0].mxu0
  %v178 = vadd.f32 0.0, %v177
  %v179 = vpop.f32.mrb[0].mxu0
  %180 = vmatprep.mubr.f32.mxu0 0.0
  %181 = vmatmul.mubr.f32.gmra.mrb[0].mxu0 %v44
  %v182 = vpop.f32.mrb[0].mxu0
  %v183 = vadd.f32 0.0, %v182
  %v184 = vpop.f32.mrb[0].mxu0
  %185 = vmatprep.mubr.f32.mxu0 0.0
  %186 = vmatmul.mubr.f32.gmra.mrb[0].mxu0 %v45
  %v187 = vpop.f32.mrb[0].mxu0
  %v188 = vadd.f32 0.0, %v187
  %v189 = vpop.f32.mrb[0].mxu0
  %190 = vmatprep.mubr.f32.mxu0 0.0
  %191 = vmatmul.mubr.f32.gmra.mrb[0].mxu0 %v46
  %v192 = vpop.f32.mrb[0].mxu0
  %v193 = vadd.f32 0.0, %v192
  %v194 = vpop.f32.mrb[0].mxu0
  %195 = vmatprep.mubr.f32.mxu0 0.0
  %196 = vmatmul.mubr.f32.gmra.mrb[0].mxu0 %v47
  %v197 = vpop.f32.mrb[0].mxu0
  %v198 = vadd.f32 0.0, %v197
  %v199 = vpop.f32.mrb[0].mxu0
  %200 = vmatprep.mubr.f32.mxu0 0.0
  %201 = vmatmul.mubr.f32.gmra.mrb[0].mxu0 %v48
  %v202 = vpop.f32.mrb[0].mxu0
  %v203 = vadd.f32 0.0, %v202
  %v204 = vpop.f32.mrb[0].mxu0
  %205 = vmatprep.mubr.f32.mxu0 0.0
  %206 = vmatmul.mubr.f32.gmra.mrb[0].mxu0 %v49
  %v207 = vpop.f32.mrb[0].mxu0
  %v208 = vadd.f32 0.0, %v207
  %v209 = vpop.f32.mrb[0].mxu0
  %210 = vmatprep.mubr.f32.mxu0 0.0
  %211 = vmatmul.mubr.f32.gmra.mrb[0].mxu0 %v50
  %v212 = vpop.f32.mrb[0].mxu0
  %v213 = vadd.f32 0.0, %v212
  %v214 = vpop.f32.mrb[0].mxu0
  %215 = vmatprep.mubr.f32.mxu0 0.0
  %216 = vmatmul.mubr.f32.gmra.mrb[0].mxu0 %v51
  %v217 = vpop.f32.mrb[0].mxu0
  %v218 = vadd.f32 0.0, %v217
  %v219 = vpop.f32.mrb[0].mxu0
  %220 = vmatprep.mubr.f32.mxu0 0.0
  %221 = vmatmul.mubr.f32.gmra.mrb[0].mxu0 %v52
  %v222 = vpop.f32.mrb[0].mxu0
  %v223 = vadd.f32 0.0, %v222
  %v224 = vpop.f32.mrb[0].mxu0
  %225 = vmatprep.mubr.f32.mxu0 0.0
  %226 = vmatmul.mubr.f32.gmra.mrb[0].mxu0 %v53
  %v227 = vpop.f32.mrb[0].mxu0
  %v228 = vadd.f32 0.0, %v227
  %v229 = vpop.f32.mrb[0].mxu0
  %230 = vdwg.mxu0
  %v231 = vadd.f32 %v54, %v153
  %v232 = vadd.f32 %v55, %v158
  %v233 = vadd.f32 %v56, %v163
  %v234 = vadd.f32 %v57, %v168
  %v235 = vadd.f32 %v58, %v173
  %v236 = vadd.f32 %v59, %v178
  %v237 = vadd.f32 %v60, %v183
  %v238 = vadd.f32 %v61, %v188
  %v239 = vadd.f32 %v62, %v193
  %v240 = vadd.f32 %v63, %v198
  %v241 = vadd.f32 %v64, %v203
  %v242 = vadd.f32 %v65, %v208
  %v243 = vadd.f32 %v66, %v213
  %v244 = vadd.f32 %v67, %v218
  %v245 = vadd.f32 %v68, %v223
  %v246 = vadd.f32 %v69, %v228
  %vm247 = vcmask 130048
  %248 = vst.msk [vmem:[#allocation2] sm:$0xff] %vm247, %v231
  %249 = vst.msk [vmem:[#allocation2 + $0x8] sm:$0xff] %vm247, %v232
  %250 = vst.msk [vmem:[#allocation2 + $0x10] sm:$0xff] %vm247, %v233
  %251 = vst.msk [vmem:[#allocation2 + $0x18] sm:$0xff] %vm247, %v234
  %252 = vst.msk [vmem:[#allocation2 + $0x20] sm:$0xff] %vm247, %v235
  %253 = vst.msk [vmem:[#allocation2 + $0x28] sm:$0xff] %vm247, %v236
  %254 = vst.msk [vmem:[#allocation2 + $0x30] sm:$0xff] %vm247, %v237
  %255 = vst.msk [vmem:[#allocation2 + $0x38] sm:$0xff] %vm247, %v238
  %256 = vst.msk [vmem:[#allocation2 + $0x40] sm:$0xff] %vm247, %v239
  %257 = vst.msk [vmem:[#allocation2 + $0x48] sm:$0xff] %vm247, %v240
  %258 = vst.msk [vmem:[#allocation2 + $0x50] sm:$0xff] %vm247, %v241
  %259 = vst.msk [vmem:[#allocation2 + $0x58] sm:$0xff] %vm247, %v242
  %260 = vst.msk [vmem:[#allocation2 + $0x60] sm:$0xff] %vm247, %v243
  %261 = vst.msk [vmem:[#allocation2 + $0x68] sm:$0xff] %vm247, %v244
  %262 = vst.msk [vmem:[#allocation2 + $0x70] sm:$0xff] %vm247, %v245
  %263 = vst.msk [vmem:[#allocation2 + $0x78] sm:$0xff] %vm247, %v246
  // Predicated region
  $region22: #{igae_encoder.4} parent=0 // pred_check
    %p264 = pneg %p17
  $region23: #{igae_encoder.4} parent=0 // pred_check_branch
    %266 = sbr.rel (%p264) target = $region25
  $region24: #{igae_encoder.4} parent=0 // pred_region
    %v267 = vld [vmem:[#allocation2] sm:$0xff]
    %v268 = vld [vmem:[#allocation2 + $0x8] sm:$0xff]
    %v269 = vld [vmem:[#allocation2 + $0x10] sm:$0xff]
    %v270 = vld [vmem:[#allocation2 + $0x18] sm:$0xff]
    %v271 = vld [vmem:[#allocation2 + $0x20] sm:$0xff]
    %v272 = vld [vmem:[#allocation2 + $0x28] sm:$0xff]
    %v273 = vld [vmem:[#allocation2 + $0x30] sm:$0xff]
    %v274 = vld [vmem:[#allocation2 + $0x38] sm:$0xff]
    %v275 = vld [vmem:[#allocation2 + $0x40] sm:$0xff]
    %v276 = vld [vmem:[#allocation2 + $0x48] sm:$0xff]
    %v277 = vld [vmem:[#allocation2 + $0x50] sm:$0xff]
    %v278 = vld [vmem:[#allocation2 + $0x58] sm:$0xff]
    %v279 = vld [vmem:[#allocation2 + $0x60] sm:$0xff]
    %v280 = vld [vmem:[#allocation2 + $0x68] sm:$0xff]
    %v281 = vld [vmem:[#allocation2 + $0x70] sm:$0xff]
    %v282 = vld [vmem:[#allocation2 + $0x78] sm:$0xff]
    %v283 = vld [vmem:[%s2] sm:$0xff]
    %v284 = vld [vmem:[%s2 + $0x8] sm:$0xff]
    %v285 = vld [vmem:[%s2 + $0x10] sm:$0xff]
    %v286 = vld [vmem:[%s2 + $0x18] sm:$0xff]
    %v287 = vld [vmem:[%s2 + $0x20] sm:$0xff]
    %v288 = vld [vmem:[%s2 + $0x28] sm:$0xff]
    %v289 = vld [vmem:[%s2 + $0x30] sm:$0xff]
    %v290 = vld [vmem:[%s2 + $0x38] sm:$0xff]
    %v291 = vld [vmem:[%s2 + $0x40] sm:$0xff]
    %v292 = vld [vmem:[%s2 + $0x48] sm:$0xff]
    %v293 = vld [vmem:[%s2 + $0x50] sm:$0xff]
    %v294 = vld [vmem:[%s2 + $0x58] sm:$0xff]
    %v295 = vld [vmem:[%s2 + $0x60] sm:$0xff]
    %v296 = vld [vmem:[%s2 + $0x68] sm:$0xff]
    %v297 = vld [vmem:[%s2 + $0x70] sm:$0xff]
    %v298 = vld [vmem:[%s2 + $0x78] sm:$0xff]
    %300 = vset.pattern.permute.xlu0 0
    %301 = vperm.xlu0 %300, %v283
    %v302 = vpop.permute.xlu0 %301
    %305 = vset.pattern.permute.xlu0 0
    %306 = vperm.xlu0 %305, %v284
    %v307 = vpop.permute.xlu0 %306
    %310 = vset.pattern.permute.xlu0 0
    %311 = vperm.xlu0 %310, %v285
    %v312 = vpop.permute.xlu0 %311
    %315 = vset.pattern.permute.xlu0 0
    %316 = vperm.xlu0 %315, %v286
    %v317 = vpop.permute.xlu0 %316
    %320 = vset.pattern.permute.xlu0 0
    %321 = vperm.xlu0 %320, %v287
    %v322 = vpop.permute.xlu0 %321
    %325 = vset.pattern.permute.xlu0 0
    %326 = vperm.xlu0 %325, %v288
    %v327 = vpop.permute.xlu0 %326
    %330 = vset.pattern.permute.xlu0 0
    %331 = vperm.xlu0 %330, %v289
    %v332 = vpop.permute.xlu0 %331
    %335 = vset.pattern.permute.xlu0 0
    %336 = vperm.xlu0 %335, %v290
    %v337 = vpop.permute.xlu0 %336
    %340 = vset.pattern.permute.xlu0 0
    %341 = vperm.xlu0 %340, %v291
    %v342 = vpop.permute.xlu0 %341
    %345 = vset.pattern.permute.xlu0 0
    %346 = vperm.xlu0 %345, %v292
    %v347 = vpop.permute.xlu0 %346
    %350 = vset.pattern.permute.xlu0 0
    %351 = vperm.xlu0 %350, %v293
    %v352 = vpop.permute.xlu0 %351
    %355 = vset.pattern.permute.xlu0 0
    %356 = vperm.xlu0 %355, %v294
    %v357 = vpop.permute.xlu0 %356
    %360 = vset.pattern.permute.xlu0 0
    %361 = vperm.xlu0 %360, %v295
    %v362 = vpop.permute.xlu0 %361
    %365 = vset.pattern.permute.xlu0 0
    %366 = vperm.xlu0 %365, %v296
    %v367 = vpop.permute.xlu0 %366
    %370 = vset.pattern.permute.xlu0 0
    %371 = vperm.xlu0 %370, %v297
    %v372 = vpop.permute.xlu0 %371
    %375 = vset.pattern.permute.xlu0 0
    %376 = vperm.xlu0 %375, %v298
    %v377 = vpop.permute.xlu0 %376
    %v379 = vmul.f32 %v267, %v302
    %v380 = vmul.f32 %v268, %v307
    %v381 = vmul.f32 %v269, %v312
    %v382 = vmul.f32 %v270, %v317
    %v383 = vmul.f32 %v271, %v322
    %v384 = vmul.f32 %v272, %v327
    %v385 = vmul.f32 %v273, %v332
    %v386 = vmul.f32 %v274, %v337
    %v387 = vmul.f32 %v275, %v342
    %v388 = vmul.f32 %v276, %v347
    %v389 = vmul.f32 %v277, %v352
    %v390 = vmul.f32 %v278, %v357
    %v391 = vmul.f32 %v279, %v362
    %v392 = vmul.f32 %v280, %v367
    %v393 = vmul.f32 %v281, %v372
    %v394 = vmul.f32 %v282, %v377
    %v395 = vld [vmem:[%s3] sm:$0xff]
    %v396 = vld [vmem:[%s3 + $0x8] sm:$0xff]
    %v398 = vsel %vm247, %v379, 0
    %v401 = vsel %vm247, %v380, 0
    %v404 = vsel %vm247, %v381, 0
    %v407 = vsel %vm247, %v382, 0
    %v410 = vsel %vm247, %v383, 0
    %v413 = vsel %vm247, %v384, 0
    %v416 = vsel %vm247, %v385, 0
    %v419 = vsel %vm247, %v386, 0
    %v422 = vsel %vm247, %v387, 0
    %v425 = vsel %vm247, %v388, 0
    %v428 = vsel %vm247, %v389, 0
    %v431 = vsel %vm247, %v390, 0
    %v434 = vsel %vm247, %v391, 0
    %v437 = vsel %vm247, %v392, 0
    %v440 = vsel %vm247, %v393, 0
    %v443 = vsel %vm247, %v394, 0
    %445 = vmatprep.subr.mxu0 0.0
    %446 = vmatpush1.msra.mxu0 %v395
    %447 = vmatprep.subr.mxu0 0.0
    %448 = vmatpush1.msra.mxu0 %v396
    %449 = vmatprep.subr.mxu0 0.0
    %450 = vmatpush1.msra.mxu0 0.0
    %451 = vmatprep.subr.mxu0 0.0
    %452 = vmatpush1.msra.mxu0 0.0
    %453 = vmatprep.subr.mxu0 0.0
    %454 = vmatpush1.msra.mxu0 0.0
    %455 = vmatprep.subr.mxu0 0.0
    %456 = vmatpush1.msra.mxu0 0.0
    %457 = vmatprep.subr.mxu0 0.0
    %458 = vmatpush1.msra.mxu0 0.0
    %459 = vmatprep.subr.mxu0 0.0
    %460 = vmatpush1.msra.mxu0 0.0
    %461 = vmatprep.subr.mxu0 0.0
    %462 = vmatpush1.msra.mxu0 0.0
    %463 = vmatprep.subr.mxu0 0.0
    %464 = vmatpush1.msra.mxu0 0.0
    %465 = vmatprep.subr.mxu0 0.0
    %466 = vmatpush1.msra.mxu0 0.0
    %467 = vmatprep.subr.mxu0 0.0
    %468 = vmatpush1.msra.mxu0 0.0
    %469 = vmatprep.subr.mxu0 0.0
    %470 = vmatpush1.msra.mxu0 0.0
    %471 = vmatprep.subr.mxu0 0.0
    %472 = vmatpush1.msra.mxu0 0.0
    %473 = vmatprep.subr.mxu0 0.0
    %474 = vmatpush1.msra.mxu0 0.0
    %475 = vmatprep.subr.mxu0 0.0
    %476 = vmatpush1.msra.mxu0 0.0
    %477 = vmatprep.subr.mxu0 0.0
    %478 = vmatpush1.msra.mxu0 0.0
    %479 = vmatprep.subr.mxu0 0.0
    %480 = vmatpush1.msra.mxu0 0.0
    %481 = vmatprep.subr.mxu0 0.0
    %482 = vmatpush1.msra.mxu0 0.0
    %483 = vmatprep.subr.mxu0 0.0
    %484 = vmatpush1.msra.mxu0 0.0
    %485 = vmatprep.subr.mxu0 0.0
    %486 = vmatpush1.msra.mxu0 0.0
    %487 = vmatprep.subr.mxu0 0.0
    %488 = vmatpush1.msra.mxu0 0.0
    %489 = vmatprep.subr.mxu0 0.0
    %490 = vmatpush1.msra.mxu0 0.0
    %491 = vmatprep.subr.mxu0 0.0
    %492 = vmatpush1.msra.mxu0 0.0
    %493 = vmatprep.subr.mxu0 0.0
    %494 = vmatpush1.msra.mxu0 0.0
    %495 = vmatprep.subr.mxu0 0.0
    %496 = vmatpush1.msra.mxu0 0.0
    %497 = vmatprep.subr.mxu0 0.0
    %498 = vmatpush1.msra.mxu0 0.0
    %499 = vmatprep.subr.mxu0 0.0
    %500 = vmatpush1.msra.mxu0 0.0
    %501 = vmatprep.subr.mxu0 0.0
    %502 = vmatpush1.msra.mxu0 0.0
    %503 = vmatprep.subr.mxu0 0.0
    %504 = vmatpush1.msra.mxu0 0.0
    %505 = vmatprep.subr.mxu0 0.0
    %506 = vmatpush1.msra.mxu0 0.0
    %507 = vmatprep.subr.mxu0 0.0
    %508 = vmatpush1.msra.mxu0 0.0
    %509 = vmatprep.mubr.f32.mxu0 0.0
    %510 = vmatmul.mubr.f32.gmra.mrb[0].mxu0 %v398
    %v511 = vpop.f32.mrb[0].mxu0
    %v512 = vadd.f32 0.0, %v511
    %v513 = vpop.f32.mrb[0].mxu0
    %514 = vmatprep.mubr.f32.mxu0 0.0
    %515 = vmatmul.mubr.f32.gmra.mrb[0].mxu0 %v401
    %v516 = vpop.f32.mrb[0].mxu0
    %v517 = vadd.f32 0.0, %v516
    %v518 = vpop.f32.mrb[0].mxu0
    %519 = vmatprep.mubr.f32.mxu0 0.0
    %520 = vmatmul.mubr.f32.gmra.mrb[0].mxu0 %v404
    %v521 = vpop.f32.mrb[0].mxu0
    %v522 = vadd.f32 0.0, %v521
    %v523 = vpop.f32.mrb[0].mxu0
    %524 = vmatprep.mubr.f32.mxu0 0.0
    %525 = vmatmul.mubr.f32.gmra.mrb[0].mxu0 %v407
    %v526 = vpop.f32.mrb[0].mxu0
    %v527 = vadd.f32 0.0, %v526
    %v528 = vpop.f32.mrb[0].mxu0
    %529 = vmatprep.mubr.f32.mxu0 0.0
    %530 = vmatmul.mubr.f32.gmra.mrb[0].mxu0 %v410
    %v531 = vpop.f32.mrb[0].mxu0
    %v532 = vadd.f32 0.0, %v531
    %v533 = vpop.f32.mrb[0].mxu0
    %534 = vmatprep.mubr.f32.mxu0 0.0
    %535 = vmatmul.mubr.f32.gmra.mrb[0].mxu0 %v413
    %v536 = vpop.f32.mrb[0].mxu0
    %v537 = vadd.f32 0.0, %v536
    %v538 = vpop.f32.mrb[0].mxu0
    %539 = vmatprep.mubr.f32.mxu0 0.0
    %540 = vmatmul.mubr.f32.gmra.mrb[0].mxu0 %v416
    %v541 = vpop.f32.mrb[0].mxu0
    %v542 = vadd.f32 0.0, %v541
    %v543 = vpop.f32.mrb[0].mxu0
    %544 = vmatprep.mubr.f32.mxu0 0.0
    %545 = vmatmul.mubr.f32.gmra.mrb[0].mxu0 %v419
    %v546 = vpop.f32.mrb[0].mxu0
    %v547 = vadd.f32 0.0, %v546
    %v548 = vpop.f32.mrb[0].mxu0
    %549 = vmatprep.mubr.f32.mxu0 0.0
    %550 = vmatmul.mubr.f32.gmra.mrb[0].mxu0 %v422
    %v551 = vpop.f32.mrb[0].mxu0
    %v552 = vadd.f32 0.0, %v551
    %v553 = vpop.f32.mrb[0].mxu0
    %554 = vmatprep.mubr.f32.mxu0 0.0
    %555 = vmatmul.mubr.f32.gmra.mrb[0].mxu0 %v425
    %v556 = vpop.f32.mrb[0].mxu0
    %v557 = vadd.f32 0.0, %v556
    %v558 = vpop.f32.mrb[0].mxu0
    %559 = vmatprep.mubr.f32.mxu0 0.0
    %560 = vmatmul.mubr.f32.gmra.mrb[0].mxu0 %v428
    %v561 = vpop.f32.mrb[0].mxu0
    %v562 = vadd.f32 0.0, %v561
    %v563 = vpop.f32.mrb[0].mxu0
    %564 = vmatprep.mubr.f32.mxu0 0.0
    %565 = vmatmul.mubr.f32.gmra.mrb[0].mxu0 %v431
    %v566 = vpop.f32.mrb[0].mxu0
    %v567 = vadd.f32 0.0, %v566
    %v568 = vpop.f32.mrb[0].mxu0
    %569 = vmatprep.mubr.f32.mxu0 0.0
    %570 = vmatmul.mubr.f32.gmra.mrb[0].mxu0 %v434
    %v571 = vpop.f32.mrb[0].mxu0
    %v572 = vadd.f32 0.0, %v571
    %v573 = vpop.f32.mrb[0].mxu0
    %574 = vmatprep.mubr.f32.mxu0 0.0
    %575 = vmatmul.mubr.f32.gmra.mrb[0].mxu0 %v437
    %v576 = vpop.f32.mrb[0].mxu0
    %v577 = vadd.f32 0.0, %v576
    %v578 = vpop.f32.mrb[0].mxu0
    %579 = vmatprep.mubr.f32.mxu0 0.0
    %580 = vmatmul.mubr.f32.gmra.mrb[0].mxu0 %v440
    %v581 = vpop.f32.mrb[0].mxu0
    %v582 = vadd.f32 0.0, %v581
    %v583 = vpop.f32.mrb[0].mxu0
    %584 = vmatprep.mubr.f32.mxu0 0.0
    %585 = vmatmul.mubr.f32.gmra.mrb[0].mxu0 %v443
    %v586 = vpop.f32.mrb[0].mxu0
    %v587 = vadd.f32 0.0, %v586
    %v588 = vpop.f32.mrb[0].mxu0
    %589 = vdwg.mxu0
    %vm590 = vcmask 64512
    %591 = vst.msk [vmem:[%s4] sm:$0xff] %vm590, %v512
    %592 = vst.msk [vmem:[%s4 + $0x8] sm:$0xff] %vm590, %v517
    %593 = vst.msk [vmem:[%s4 + $0x10] sm:$0xff] %vm590, %v522
    %594 = vst.msk [vmem:[%s4 + $0x18] sm:$0xff] %vm590, %v527
    %595 = vst.msk [vmem:[%s4 + $0x20] sm:$0xff] %vm590, %v532
    %596 = vst.msk [vmem:[%s4 + $0x28] sm:$0xff] %vm590, %v537
    %597 = vst.msk [vmem:[%s4 + $0x30] sm:$0xff] %vm590, %v542
    %598 = vst.msk [vmem:[%s4 + $0x38] sm:$0xff] %vm590, %v547
    %599 = vst.msk [vmem:[%s4 + $0x40] sm:$0xff] %vm590, %v552
    %600 = vst.msk [vmem:[%s4 + $0x48] sm:$0xff] %vm590, %v557
    %601 = vst.msk [vmem:[%s4 + $0x50] sm:$0xff] %vm590, %v562
    %602 = vst.msk [vmem:[%s4 + $0x58] sm:$0xff] %vm590, %v567
    %603 = vst.msk [vmem:[%s4 + $0x60] sm:$0xff] %vm590, %v572
    %604 = vst.msk [vmem:[%s4 + $0x68] sm:$0xff] %vm590, %v577
    %605 = vst.msk [vmem:[%s4 + $0x70] sm:$0xff] %vm590, %v582
    %606 = vst.msk [vmem:[%s4 + $0x78] sm:$0xff] %vm590, %v587
  $region25: #{igae_encoder.4} parent=0 // pred_fallthru
    _
  // Predicated region
  $region26: #{igae_encoder.4} parent=0 // pred_check
    _
  $region27: #{igae_encoder.4} parent=0 // pred_check_branch
    %608 = sbr.rel (0) target = $region29
  $region28: #{igae_encoder.4} parent=0 // pred_region
    _
  $region29: #{igae_encoder.4} parent=0 // pred_fallthru
    _
  // Predicated region
  $region30: #{igae_encoder.4} parent=0 // pred_check
    _
  $region31: #{igae_encoder.4} parent=0 // pred_check_branch
    %610 = sbr.rel (0) target = $region33
  $region32: #{igae_encoder.4} parent=0 // pred_region
    _
  $region33: #{igae_encoder.4} parent=0 // pred_fallthru
    _

</llo_original>
